<compile_context>
chip_gen: v7x
topology: tpu7x:2x2x1
jax: 0.10.0
libtpu: 0.0.40
codegen_flags: <defaults>
</compile_context>

<pallas_src>
import jax
import jax.numpy as jnp
from jax import lax
from jax.experimental import pallas as pl
from jax.experimental.pallas import tpu as pltpu

_MXU_DTYPE = jnp.bfloat16  # MXU operand dtype (accumulation stays f32)


def _mm(a, w):
    """bf16-operand matmul with f32 accumulation (same math in kernel & reference)."""
    return jnp.dot(a.astype(_MXU_DTYPE), w.astype(_MXU_DTYPE),
                   preferred_element_type=jnp.float32)


def _round_up(n, m):
    return (n + m - 1) // m * m


def _rnn_recurrence_kernel(gin0_ref, h0_ref, w_ihr_ref, w_hh_ref, b_ref,
                           out_ref, hn_ref, seq_buf, gin_buf):
    """Serial tanh-RNN recurrence for one batch tile.

    gin0_ref: (S, TB, Hp) f32  layer-0 input projection + bias (precomputed)
    h0_ref:   (L, TB, Hp) f32  initial hidden state per layer
    w_ihr_ref:(max(L-1,1), Hp, Hp) bf16  input weights (transposed) for layers >= 1
    w_hh_ref: (L, Hp, Hp) bf16 recurrent weights (transposed)
    b_ref:    (L, 1, Hp)  f32  folded bias (b_ih + b_hh); index 0 unused (folded in gin0)
    out_ref:  (S, TB, Hp) f32  last layer's hidden sequence (lane-dense)
    hn_ref:   (L, TB, Hp) f32  final hidden state of every layer
    seq_buf:  (S, TB, Hp) f32  scratch: intermediate layer's output sequence
    gin_buf:  (S, TB, Hp) f32  scratch: hoisted input-path activations (layers >= 1)
    """
    S, TB, Hp = gin0_ref.shape
    L = h0_ref.shape[0]
    mxu_dtype = w_hh_ref.dtype
    # Fully unroll short sequences so the LLO scheduler sees the whole chain;
    # cap unroll for long sequences to bound code size / vreg pressure.
    unroll = True if S <= 16 else 8

    def run_layer(l, gin_ref, dst_ref):
        # Keep the (Hp, Hp) recurrent weight resident in vregs across all steps.
        w_hh_l = w_hh_ref[l]

        def step(t, h):
            # Only the recurrent matmul sits on the serial critical path.
            pre = gin_ref[t] + jnp.dot(h.astype(mxu_dtype), w_hh_l,
                                       preferred_element_type=jnp.float32)
            h_new = jnp.tanh(pre)                 # f32 tanh on the EUP
            dst_ref[t] = h_new
            return h_new

        h_last = lax.fori_loop(0, S, step, h0_ref[l], unroll=unroll)
        hn_ref[l] = h_last

    # ---- layer 0: input projection already precomputed (in gin0_ref) ----
    run_layer(0, gin0_ref, out_ref if L == 1 else seq_buf)

    # ---- layers 1 .. L-1: hoist the whole-sequence input matmul out of the loop ----
    for l in range(1, L):
        inp = seq_buf[...].astype(mxu_dtype).reshape(S * TB, Hp)
        gin = jnp.dot(inp, w_ihr_ref[l - 1], preferred_element_type=jnp.float32)
        gin_buf[...] = gin.reshape(S, TB, Hp) + b_ref[l]
        run_layer(l, gin_buf, out_ref if l == L - 1 else seq_buf)


@jax.jit
def vanilla_rnn_forward(x, h0, params):
    """x: (batch, seq, input_size) f32; h0: (num_layers, batch, hidden) f32."""
    B, S, I = x.shape
    L, _, H = h0.shape
    Hp = _round_up(H, 128)                   # lane-dense hidden
    TB = min(_round_up(B, 8), 128)           # batch tile (sublane-aligned)
    Bp = _round_up(B, TB)
    Lr = max(L - 1, 1)

    # Time-major layout, pad batch with zeros.
    x_tm = jnp.transpose(x, (1, 0, 2))                               # (S, B, I)
    x_tm = jnp.pad(x_tm, ((0, 0), (0, Bp - B), (0, 0)))              # (S, Bp, I)

    # Zero-pad hidden dims: padded output lanes get zero weights + zero bias, so
    # padded hidden lanes stay exactly 0 through the recurrence (tanh(0) = 0 is
    # avoided because padded pre-activations are exactly 0 only via zero weight
    # columns AND zero bias, giving tanh(0) = 0 -> stays 0).
    w_ih0 = jnp.pad(params["w_ih0"], ((0, 0), (0, Hp - H)))
    w_ihr = jnp.pad(params["w_ihr"], ((0, 0), (0, Hp - H), (0, Hp - H)))
    w_hh = jnp.pad(params["w_hh"], ((0, 0), (0, Hp - H), (0, Hp - H)))
    bias = jnp.pad(params["b_ih"] + params["b_hh"],                  # folded bias
                   ((0, 0), (0, 0), (0, Hp - H)))                    # (L, 1, Hp)
    h0_p = jnp.pad(h0, ((0, 0), (0, Bp - B), (0, Hp - H)))           # (L, Bp, Hp)

    # Hoisted layer-0 input projection (+ bias): one big non-recurrent matmul in XLA.
    gin0 = (_mm(x_tm.reshape(S * Bp, I), w_ih0).reshape(S, Bp, Hp) + bias[0])

    # TODO(synk): for very long sequences the (S, TB, Hp) buffers should be
    # streamed through HBM in chunks (emit_pipeline) to respect v7x's 64 MiB VMEM.
    out_seq, hn_p = pl.pallas_call(
        _rnn_recurrence_kernel,
        out_shape=(
            jax.ShapeDtypeStruct((S, Bp, Hp), jnp.float32),
            jax.ShapeDtypeStruct((L, Bp, Hp), jnp.float32),
        ),
        grid_spec=pltpu.PrefetchScalarGridSpec(
            num_scalar_prefetch=0,
            grid=(Bp // TB,),                                        # batch tiles
            in_specs=[
                pl.BlockSpec((S, TB, Hp), lambda i: (0, i, 0)),      # gin0
                pl.BlockSpec((L, TB, Hp), lambda i: (0, i, 0)),      # h0
                pl.BlockSpec((Lr, Hp, Hp), lambda i: (0, 0, 0)),     # w_ihr (bf16)
                pl.BlockSpec((L, Hp, Hp), lambda i: (0, 0, 0)),      # w_hh  (bf16)
                pl.BlockSpec((L, 1, Hp), lambda i: (0, 0, 0)),       # bias
            ],
            out_specs=(
                pl.BlockSpec((S, TB, Hp), lambda i: (0, i, 0)),      # last-layer seq
                pl.BlockSpec((L, TB, Hp), lambda i: (0, i, 0)),      # hn
            ),
            scratch_shapes=[
                pltpu.VMEM((S, TB, Hp), jnp.float32),                # seq_buf
                pltpu.VMEM((S, TB, Hp), jnp.float32),                # gin_buf
            ],
        ),
        compiler_params=pltpu.CompilerParams(
            dimension_semantics=("parallel",),       # batch tiles split across cores
            vmem_limit_bytes=32 * 1024 * 1024,
        ),
    )(gin0, h0_p,
      w_ihr.astype(_MXU_DTYPE), w_hh.astype(_MXU_DTYPE), bias)

    # FC head (H -> 2) is non-recurrent and lane-sparse -> keep it in XLA.
    seq = out_seq[:, :B, :H]                                         # (S, B, H)
    logits = (_mm(seq.reshape(S * B, H), params["fc_w"]).reshape(S, B, 2)
              + params["fc_b"])
    out = jnp.transpose(logits, (1, 0, 2))                           # (B, S, 2)
    hn = hn_p[:, :B, :H]                                             # (L, B, H)
    return out, hn


def init_params(key, input_size, hidden_size, num_layers):
    """Deterministic init mimicking PyTorch's U(-1/sqrt(H), 1/sqrt(H)).

    Weight matrices are stored pre-transposed so everything computes `act @ W`.
    """
    bound = 1.0 / float(hidden_size) ** 0.5
    ks = jax.random.split(key, 7)
    u = lambda k, shape: jax.random.uniform(k, shape, jnp.float32, -bound, bound)

    n_rest = max(num_layers - 1, 1)
    w_ihr = u(ks[1], (n_rest, hidden_size, hidden_size))
    if num_layers == 1:
        w_ihr = jnp.zeros_like(w_ihr)                                # unused dummy
    return {
        "w_ih0": u(ks[0], (input_size, hidden_size)),                # W_ih[0]^T
        "w_ihr": w_ihr,                                              # W_ih[l]^T, l>=1
        "w_hh": u(ks[2], (num_layers, hidden_size, hidden_size)),    # W_hh[l]^T
        "b_ih": u(ks[3], (num_layers, 1, hidden_size)),
        "b_hh": u(ks[4], (num_layers, 1, hidden_size)),
        "fc_w": u(ks[5], (hidden_size, 2)),                          # W_fc^T
        "fc_b": u(ks[6], (1, 2)),
    }


def reference_forward(x, h0, p):
    """Pure-JAX reference matching nn.RNN(batch_first=True) + Linear semantics
    (same bf16-operand / f32-accumulation matmul math as the kernel path)."""
    B, S, _ = x.shape
    L, _, H = h0.shape
    layer_in = x
    hns = []
    for l in range(L):
        w_in = p["w_ih0"] if l == 0 else p["w_ihr"][l - 1]
        b = p["b_ih"][l] + p["b_hh"][l]
        h = h0[l]
        outs = []
        for t in range(S):
            h = jnp.tanh(_mm(layer_in[:, t], w_in) + _mm(h, p["w_hh"][l]) + b)
            outs.append(h)
        layer_in = jnp.stack(outs, axis=1)
        hns.append(h)
    out = _mm(layer_in.reshape(B * S, H), p["fc_w"]).reshape(B, S, 2) + p["fc_b"]
    return out, jnp.stack(hns, axis=0)


if __name__ == "__main__":
    input_size, hidden_size, num_layers = 4, 32, 2
    batch, seq = 2, 8

    key = jax.random.PRNGKey(0)
    kx, kh, kp = jax.random.split(key, 3)

    x = jax.random.normal(kx, (batch, seq, input_size), jnp.float32)
    h0 = jax.random.normal(kh, (num_layers, batch, hidden_size), jnp.float32)
    params = init_params(kp, input_size, hidden_size, num_layers)

    out, hn = vanilla_rnn_forward(x, h0, params)
    out = jax.block_until_ready(out)
    hn = jax.block_until_ready(hn)

    out_ref, hn_ref = reference_forward(x, h0, params)
    assert out.shape == (batch, seq, 2) and hn.shape == (num_layers, batch, hidden_size)
    assert jnp.allclose(out, out_ref, atol=1e-2, rtol=1e-2)
    assert jnp.allclose(hn, hn_ref, atol=1e-2, rtol=1e-2)

    print("KERNEL_OK")
</pallas_src>

<mosaic_0001>
module attributes {stable_mosaic.version = 11 : i64} {
  func.func @_rnn_recurrence_kernel(%arg0: i32, %arg1: memref<8x8x128xf32, #tpu.memory_space<vmem>>, %arg2: memref<2x8x128xf32, #tpu.memory_space<vmem>>, %arg3: memref<1x128x128xbf16, #tpu.memory_space<vmem>>, %arg4: memref<2x128x128xbf16, #tpu.memory_space<vmem>>, %arg5: memref<2x1x128xf32, #tpu.memory_space<vmem>>, %arg6: memref<8x8x128xf32, #tpu.memory_space<vmem>>, %arg7: memref<2x8x128xf32, #tpu.memory_space<vmem>>, %arg8: memref<8x8x128xf32, #tpu.memory_space<vmem>>, %arg9: memref<8x8x128xf32, #tpu.memory_space<vmem>>) attributes {dimension_semantics = [#tpu.dimension_semantics<parallel>], iteration_bounds = array<i64: 1>, scalar_prefetch = 0 : i64, scratch_operands = 2 : i64, tpu.core_type = #tpu.core_type<tc>, window_params = [{transform_indices = @transform_0, window_bounds = array<i64: 8, 8, 128>}, {transform_indices = @transform_1, window_bounds = array<i64: 2, 8, 128>}, {pipeline_mode = #tpu.pipeline_mode<synchronous>, transform_indices = @transform_2, window_bounds = array<i64: 1, 128, 128>}, {pipeline_mode = #tpu.pipeline_mode<synchronous>, transform_indices = @transform_3, window_bounds = array<i64: 2, 128, 128>}, {pipeline_mode = #tpu.pipeline_mode<synchronous>, transform_indices = @transform_4, window_bounds = array<i64: 2, 1, 128>}, {transform_indices = @transform_5, window_bounds = array<i64: 8, 8, 128>}, {transform_indices = @transform_6, window_bounds = array<i64: 2, 8, 128>}]} {
    %c0 = arith.constant 0 : index
    %c0_0 = arith.constant 0 : index
    %c0_1 = arith.constant 0 : index
    %0 = vector.load %arg4[%c0, %c0_0, %c0_1] : memref<2x128x128xbf16, #tpu.memory_space<vmem>>, vector<1x128x128xbf16>
    %1 = vector.shape_cast %0 : vector<1x128x128xbf16> to vector<128x128xbf16>
    %c0_2 = arith.constant 0 : index
    %c0_3 = arith.constant 0 : index
    %c0_4 = arith.constant 0 : index
    %2 = vector.load %arg2[%c0_2, %c0_3, %c0_4] : memref<2x8x128xf32, #tpu.memory_space<vmem>>, vector<1x8x128xf32>
    %3 = vector.shape_cast %2 : vector<1x8x128xf32> to vector<8x128xf32>
    %c0_i32 = arith.constant 0 : i32
    %4 = arith.index_cast %c0_i32 : i32 to index
    %c0_5 = arith.constant 0 : index
    %c0_6 = arith.constant 0 : index
    %5 = vector.load %arg1[%4, %c0_5, %c0_6] : memref<8x8x128xf32, #tpu.memory_space<vmem>>, vector<1x8x128xf32>
    %6 = vector.shape_cast %5 : vector<1x8x128xf32> to vector<8x128xf32>
    %7 = arith.truncf %3 : vector<8x128xf32> to vector<8x128xbf16>
    %cst = arith.constant dense<0.000000e+00> : vector<8x128xf32>
    %8 = tpu.matmul %7, %1, %cst {dimension_numbers = #tpu.dot_dimension_numbers<[1], [0], [0], [1], [0, 0, 1, 1], [], []>} : vector<8x128xbf16>, vector<128x128xbf16>, vector<8x128xf32> -> vector<8x128xf32>
    %9 = arith.addf %6, %8 : vector<8x128xf32>
    %10 = math.tanh %9 : vector<8x128xf32>
    %11 = arith.index_cast %c0_i32 : i32 to index
    %c0_7 = arith.constant 0 : index
    %c0_8 = arith.constant 0 : index
    %12 = vector.load %arg8[%11, %c0_7, %c0_8] : memref<8x8x128xf32, #tpu.memory_space<vmem>>, vector<1x8x128xf32>
    %13 = vector.shape_cast %12 : vector<1x8x128xf32> to vector<8x128xf32>
    %14 = vector.shape_cast %10 : vector<8x128xf32> to vector<1x8x128xf32>
    tpu.vector_store %arg8[%11, %c0_7, %c0_8], %14 {strides = array<i32>} : memref<8x8x128xf32, #tpu.memory_space<vmem>>, vector<1x8x128xf32>,
    %c1_i32 = arith.constant 1 : i32
    %15 = arith.index_cast %c1_i32 : i32 to index
    %c0_9 = arith.constant 0 : index
    %c0_10 = arith.constant 0 : index
    %16 = vector.load %arg1[%15, %c0_9, %c0_10] : memref<8x8x128xf32, #tpu.memory_space<vmem>>, vector<1x8x128xf32>
    %17 = vector.shape_cast %16 : vector<1x8x128xf32> to vector<8x128xf32>
    %18 = arith.truncf %10 : vector<8x128xf32> to vector<8x128xbf16>
    %cst_11 = arith.constant dense<0.000000e+00> : vector<8x128xf32>
    %19 = tpu.matmul %18, %1, %cst_11 {dimension_numbers = #tpu.dot_dimension_numbers<[1], [0], [0], [1], [0, 0, 1, 1], [], []>} : vector<8x128xbf16>, vector<128x128xbf16>, vector<8x128xf32> -> vector<8x128xf32>
    %20 = arith.addf %17, %19 : vector<8x128xf32>
    %21 = math.tanh %20 : vector<8x128xf32>
    %22 = arith.index_cast %c1_i32 : i32 to index
    %c0_12 = arith.constant 0 : index
    %c0_13 = arith.constant 0 : index
    %23 = vector.load %arg8[%22, %c0_12, %c0_13] : memref<8x8x128xf32, #tpu.memory_space<vmem>>, vector<1x8x128xf32>
    %24 = vector.shape_cast %23 : vector<1x8x128xf32> to vector<8x128xf32>
    %25 = vector.shape_cast %21 : vector<8x128xf32> to vector<1x8x128xf32>
    tpu.vector_store %arg8[%22, %c0_12, %c0_13], %25 {strides = array<i32>} : memref<8x8x128xf32, #tpu.memory_space<vmem>>, vector<1x8x128xf32>,
    %c2_i32 = arith.constant 2 : i32
    %26 = arith.index_cast %c2_i32 : i32 to index
    %c0_14 = arith.constant 0 : index
    %c0_15 = arith.constant 0 : index
    %27 = vector.load %arg1[%26, %c0_14, %c0_15] : memref<8x8x128xf32, #tpu.memory_space<vmem>>, vector<1x8x128xf32>
    %28 = vector.shape_cast %27 : vector<1x8x128xf32> to vector<8x128xf32>
    %29 = arith.truncf %21 : vector<8x128xf32> to vector<8x128xbf16>
    %cst_16 = arith.constant dense<0.000000e+00> : vector<8x128xf32>
    %30 = tpu.matmul %29, %1, %cst_16 {dimension_numbers = #tpu.dot_dimension_numbers<[1], [0], [0], [1], [0, 0, 1, 1], [], []>} : vector<8x128xbf16>, vector<128x128xbf16>, vector<8x128xf32> -> vector<8x128xf32>
    %31 = arith.addf %28, %30 : vector<8x128xf32>
    %32 = math.tanh %31 : vector<8x128xf32>
    %33 = arith.index_cast %c2_i32 : i32 to index
    %c0_17 = arith.constant 0 : index
    %c0_18 = arith.constant 0 : index
    %34 = vector.load %arg8[%33, %c0_17, %c0_18] : memref<8x8x128xf32, #tpu.memory_space<vmem>>, vector<1x8x128xf32>
    %35 = vector.shape_cast %34 : vector<1x8x128xf32> to vector<8x128xf32>
    %36 = vector.shape_cast %32 : vector<8x128xf32> to vector<1x8x128xf32>
    tpu.vector_store %arg8[%33, %c0_17, %c0_18], %36 {strides = array<i32>} : memref<8x8x128xf32, #tpu.memory_space<vmem>>, vector<1x8x128xf32>,
    %c3_i32 = arith.constant 3 : i32
    %37 = arith.index_cast %c3_i32 : i32 to index
    %c0_19 = arith.constant 0 : index
    %c0_20 = arith.constant 0 : index
    %38 = vector.load %arg1[%37, %c0_19, %c0_20] : memref<8x8x128xf32, #tpu.memory_space<vmem>>, vector<1x8x128xf32>
    %39 = vector.shape_cast %38 : vector<1x8x128xf32> to vector<8x128xf32>
    %40 = arith.truncf %32 : vector<8x128xf32> to vector<8x128xbf16>
    %cst_21 = arith.constant dense<0.000000e+00> : vector<8x128xf32>
    %41 = tpu.matmul %40, %1, %cst_21 {dimension_numbers = #tpu.dot_dimension_numbers<[1], [0], [0], [1], [0, 0, 1, 1], [], []>} : vector<8x128xbf16>, vector<128x128xbf16>, vector<8x128xf32> -> vector<8x128xf32>
    %42 = arith.addf %39, %41 : vector<8x128xf32>
    %43 = math.tanh %42 : vector<8x128xf32>
    %44 = arith.index_cast %c3_i32 : i32 to index
    %c0_22 = arith.constant 0 : index
    %c0_23 = arith.constant 0 : index
    %45 = vector.load %arg8[%44, %c0_22, %c0_23] : memref<8x8x128xf32, #tpu.memory_space<vmem>>, vector<1x8x128xf32>
    %46 = vector.shape_cast %45 : vector<1x8x128xf32> to vector<8x128xf32>
    %47 = vector.shape_cast %43 : vector<8x128xf32> to vector<1x8x128xf32>
    tpu.vector_store %arg8[%44, %c0_22, %c0_23], %47 {strides = array<i32>} : memref<8x8x128xf32, #tpu.memory_space<vmem>>, vector<1x8x128xf32>,
    %c4_i32 = arith.constant 4 : i32
    %48 = arith.index_cast %c4_i32 : i32 to index
    %c0_24 = arith.constant 0 : index
    %c0_25 = arith.constant 0 : index
    %49 = vector.load %arg1[%48, %c0_24, %c0_25] : memref<8x8x128xf32, #tpu.memory_space<vmem>>, vector<1x8x128xf32>
    %50 = vector.shape_cast %49 : vector<1x8x128xf32> to vector<8x128xf32>
    %51 = arith.truncf %43 : vector<8x128xf32> to vector<8x128xbf16>
    %cst_26 = arith.constant dense<0.000000e+00> : vector<8x128xf32>
    %52 = tpu.matmul %51, %1, %cst_26 {dimension_numbers = #tpu.dot_dimension_numbers<[1], [0], [0], [1], [0, 0, 1, 1], [], []>} : vector<8x128xbf16>, vector<128x128xbf16>, vector<8x128xf32> -> vector<8x128xf32>
    %53 = arith.addf %50, %52 : vector<8x128xf32>
    %54 = math.tanh %53 : vector<8x128xf32>
    %55 = arith.index_cast %c4_i32 : i32 to index
    %c0_27 = arith.constant 0 : index
    %c0_28 = arith.constant 0 : index
    %56 = vector.load %arg8[%55, %c0_27, %c0_28] : memref<8x8x128xf32, #tpu.memory_space<vmem>>, vector<1x8x128xf32>
    %57 = vector.shape_cast %56 : vector<1x8x128xf32> to vector<8x128xf32>
    %58 = vector.shape_cast %54 : vector<8x128xf32> to vector<1x8x128xf32>
    tpu.vector_store %arg8[%55, %c0_27, %c0_28], %58 {strides = array<i32>} : memref<8x8x128xf32, #tpu.memory_space<vmem>>, vector<1x8x128xf32>,
    %c5_i32 = arith.constant 5 : i32
    %59 = arith.index_cast %c5_i32 : i32 to index
    %c0_29 = arith.constant 0 : index
    %c0_30 = arith.constant 0 : index
    %60 = vector.load %arg1[%59, %c0_29, %c0_30] : memref<8x8x128xf32, #tpu.memory_space<vmem>>, vector<1x8x128xf32>
    %61 = vector.shape_cast %60 : vector<1x8x128xf32> to vector<8x128xf32>
    %62 = arith.truncf %54 : vector<8x128xf32> to vector<8x128xbf16>
    %cst_31 = arith.constant dense<0.000000e+00> : vector<8x128xf32>
    %63 = tpu.matmul %62, %1, %cst_31 {dimension_numbers = #tpu.dot_dimension_numbers<[1], [0], [0], [1], [0, 0, 1, 1], [], []>} : vector<8x128xbf16>, vector<128x128xbf16>, vector<8x128xf32> -> vector<8x128xf32>
    %64 = arith.addf %61, %63 : vector<8x128xf32>
    %65 = math.tanh %64 : vector<8x128xf32>
    %66 = arith.index_cast %c5_i32 : i32 to index
    %c0_32 = arith.constant 0 : index
    %c0_33 = arith.constant 0 : index
    %67 = vector.load %arg8[%66, %c0_32, %c0_33] : memref<8x8x128xf32, #tpu.memory_space<vmem>>, vector<1x8x128xf32>
    %68 = vector.shape_cast %67 : vector<1x8x128xf32> to vector<8x128xf32>
    %69 = vector.shape_cast %65 : vector<8x128xf32> to vector<1x8x128xf32>
    tpu.vector_store %arg8[%66, %c0_32, %c0_33], %69 {strides = array<i32>} : memref<8x8x128xf32, #tpu.memory_space<vmem>>, vector<1x8x128xf32>,
    %c6_i32 = arith.constant 6 : i32
    %70 = arith.index_cast %c6_i32 : i32 to index
    %c0_34 = arith.constant 0 : index
    %c0_35 = arith.constant 0 : index
    %71 = vector.load %arg1[%70, %c0_34, %c0_35] : memref<8x8x128xf32, #tpu.memory_space<vmem>>, vector<1x8x128xf32>
    %72 = vector.shape_cast %71 : vector<1x8x128xf32> to vector<8x128xf32>
    %73 = arith.truncf %65 : vector<8x128xf32> to vector<8x128xbf16>
    %cst_36 = arith.constant dense<0.000000e+00> : vector<8x128xf32>
    %74 = tpu.matmul %73, %1, %cst_36 {dimension_numbers = #tpu.dot_dimension_numbers<[1], [0], [0], [1], [0, 0, 1, 1], [], []>} : vector<8x128xbf16>, vector<128x128xbf16>, vector<8x128xf32> -> vector<8x128xf32>
    %75 = arith.addf %72, %74 : vector<8x128xf32>
    %76 = math.tanh %75 : vector<8x128xf32>
    %77 = arith.index_cast %c6_i32 : i32 to index
    %c0_37 = arith.constant 0 : index
    %c0_38 = arith.constant 0 : index
    %78 = vector.load %arg8[%77, %c0_37, %c0_38] : memref<8x8x128xf32, #tpu.memory_space<vmem>>, vector<1x8x128xf32>
    %79 = vector.shape_cast %78 : vector<1x8x128xf32> to vector<8x128xf32>
    %80 = vector.shape_cast %76 : vector<8x128xf32> to vector<1x8x128xf32>
    tpu.vector_store %arg8[%77, %c0_37, %c0_38], %80 {strides = array<i32>} : memref<8x8x128xf32, #tpu.memory_space<vmem>>, vector<1x8x128xf32>,
    %c7_i32 = arith.constant 7 : i32
    %81 = arith.index_cast %c7_i32 : i32 to index
    %c0_39 = arith.constant 0 : index
    %c0_40 = arith.constant 0 : index
    %82 = vector.load %arg1[%81, %c0_39, %c0_40] : memref<8x8x128xf32, #tpu.memory_space<vmem>>, vector<1x8x128xf32>
    %83 = vector.shape_cast %82 : vector<1x8x128xf32> to vector<8x128xf32>
    %84 = arith.truncf %76 : vector<8x128xf32> to vector<8x128xbf16>
    %cst_41 = arith.constant dense<0.000000e+00> : vector<8x128xf32>
    %85 = tpu.matmul %84, %1, %cst_41 {dimension_numbers = #tpu.dot_dimension_numbers<[1], [0], [0], [1], [0, 0, 1, 1], [], []>} : vector<8x128xbf16>, vector<128x128xbf16>, vector<8x128xf32> -> vector<8x128xf32>
    %86 = arith.addf %83, %85 : vector<8x128xf32>
    %87 = math.tanh %86 : vector<8x128xf32>
    %88 = arith.index_cast %c7_i32 : i32 to index
    %c0_42 = arith.constant 0 : index
    %c0_43 = arith.constant 0 : index
    %89 = vector.load %arg8[%88, %c0_42, %c0_43] : memref<8x8x128xf32, #tpu.memory_space<vmem>>, vector<1x8x128xf32>
    %90 = vector.shape_cast %89 : vector<1x8x128xf32> to vector<8x128xf32>
    %91 = vector.shape_cast %87 : vector<8x128xf32> to vector<1x8x128xf32>
    tpu.vector_store %arg8[%88, %c0_42, %c0_43], %91 {strides = array<i32>} : memref<8x8x128xf32, #tpu.memory_space<vmem>>, vector<1x8x128xf32>,
    %c8_i32 = arith.constant 8 : i32
    %c0_44 = arith.constant 0 : index
    %c0_45 = arith.constant 0 : index
    %c0_46 = arith.constant 0 : index
    %92 = vector.load %arg7[%c0_44, %c0_45, %c0_46] : memref<2x8x128xf32, #tpu.memory_space<vmem>>, vector<1x8x128xf32>
    %93 = vector.shape_cast %92 : vector<1x8x128xf32> to vector<8x128xf32>
    %94 = vector.shape_cast %87 : vector<8x128xf32> to vector<1x8x128xf32>
    tpu.vector_store %arg7[%c0_44, %c0_45, %c0_46], %94 {strides = array<i32>} : memref<2x8x128xf32, #tpu.memory_space<vmem>>, vector<1x8x128xf32>,
    %c0_47 = arith.constant 0 : index
    %c0_48 = arith.constant 0 : index
    %c0_49 = arith.constant 0 : index
    %95 = vector.load %arg8[%c0_47, %c0_48, %c0_49] : memref<8x8x128xf32, #tpu.memory_space<vmem>>, vector<8x8x128xf32>
    %96 = arith.truncf %95 : vector<8x8x128xf32> to vector<8x8x128xbf16>
    %97 = vector.shape_cast %96 : vector<8x8x128xbf16> to vector<64x128xbf16>
    %c0_50 = arith.constant 0 : index
    %c0_51 = arith.constant 0 : index
    %c0_52 = arith.constant 0 : index
    %98 = vector.load %arg3[%c0_50, %c0_51, %c0_52] : memref<1x128x128xbf16, #tpu.memory_space<vmem>>, vector<1x128x128xbf16>
    %99 = vector.shape_cast %98 : vector<1x128x128xbf16> to vector<128x128xbf16>
    %cst_53 = arith.constant dense<0.000000e+00> : vector<64x128xf32>
    %100 = tpu.matmul %97, %99, %cst_53 {dimension_numbers = #tpu.dot_dimension_numbers<[1], [0], [0], [1], [0, 0, 1, 1], [], []>} : vector<64x128xbf16>, vector<128x128xbf16>, vector<64x128xf32> -> vector<64x128xf32>
    %101 = vector.shape_cast %100 : vector<64x128xf32> to vector<8x8x128xf32>
    %c1 = arith.constant 1 : index
    %c0_54 = arith.constant 0 : index
    %c0_55 = arith.constant 0 : index
    %102 = vector.load %arg5[%c1, %c0_54, %c0_55] : memref<2x1x128xf32, #tpu.memory_space<vmem>>, vector<1x1x128xf32>
    %103 = vector.shape_cast %102 : vector<1x1x128xf32> to vector<1x128xf32>
    %104 = vector.shape_cast %103 : vector<1x128xf32> to vector<1x1x128xf32>
    %105 = vector.broadcast %104 : vector<1x1x128xf32> to vector<8x8x128xf32>
    %106 = arith.addf %101, %105 : vector<8x8x128xf32>
    %c0_56 = arith.constant 0 : index
    %c0_57 = arith.constant 0 : index
    %c0_58 = arith.constant 0 : index
    %107 = vector.load %arg9[%c0_56, %c0_57, %c0_58] : memref<8x8x128xf32, #tpu.memory_space<vmem>>, vector<8x8x128xf32>
    tpu.vector_store %arg9[%c0_56, %c0_57, %c0_58], %106 {strides = array<i32>} : memref<8x8x128xf32, #tpu.memory_space<vmem>>, vector<8x8x128xf32>,
    %c1_59 = arith.constant 1 : index
    %c0_60 = arith.constant 0 : index
    %c0_61 = arith.constant 0 : index
    %108 = vector.load %arg4[%c1_59, %c0_60, %c0_61] : memref<2x128x128xbf16, #tpu.memory_space<vmem>>, vector<1x128x128xbf16>
    %109 = vector.shape_cast %108 : vector<1x128x128xbf16> to vector<128x128xbf16>
    %c1_62 = arith.constant 1 : index
    %c0_63 = arith.constant 0 : index
    %c0_64 = arith.constant 0 : index
    %110 = vector.load %arg2[%c1_62, %c0_63, %c0_64] : memref<2x8x128xf32, #tpu.memory_space<vmem>>, vector<1x8x128xf32>
    %111 = vector.shape_cast %110 : vector<1x8x128xf32> to vector<8x128xf32>
    %c0_i32_65 = arith.constant 0 : i32
    %112 = arith.index_cast %c0_i32_65 : i32 to index
    %c0_66 = arith.constant 0 : index
    %c0_67 = arith.constant 0 : index
    %113 = vector.load %arg9[%112, %c0_66, %c0_67] : memref<8x8x128xf32, #tpu.memory_space<vmem>>, vector<1x8x128xf32>
    %114 = vector.shape_cast %113 : vector<1x8x128xf32> to vector<8x128xf32>
    %115 = arith.truncf %111 : vector<8x128xf32> to vector<8x128xbf16>
    %cst_68 = arith.constant dense<0.000000e+00> : vector<8x128xf32>
    %116 = tpu.matmul %115, %109, %cst_68 {dimension_numbers = #tpu.dot_dimension_numbers<[1], [0], [0], [1], [0, 0, 1, 1], [], []>} : vector<8x128xbf16>, vector<128x128xbf16>, vector<8x128xf32> -> vector<8x128xf32>
    %117 = arith.addf %114, %116 : vector<8x128xf32>
    %118 = math.tanh %117 : vector<8x128xf32>
    %119 = arith.index_cast %c0_i32_65 : i32 to index
    %c0_69 = arith.constant 0 : index
    %c0_70 = arith.constant 0 : index
    %120 = vector.load %arg6[%119, %c0_69, %c0_70] : memref<8x8x128xf32, #tpu.memory_space<vmem>>, vector<1x8x128xf32>
    %121 = vector.shape_cast %120 : vector<1x8x128xf32> to vector<8x128xf32>
    %122 = vector.shape_cast %118 : vector<8x128xf32> to vector<1x8x128xf32>
    tpu.vector_store %arg6[%119, %c0_69, %c0_70], %122 {strides = array<i32>} : memref<8x8x128xf32, #tpu.memory_space<vmem>>, vector<1x8x128xf32>,
    %c1_i32_71 = arith.constant 1 : i32
    %123 = arith.index_cast %c1_i32_71 : i32 to index
    %c0_72 = arith.constant 0 : index
    %c0_73 = arith.constant 0 : index
    %124 = vector.load %arg9[%123, %c0_72, %c0_73] : memref<8x8x128xf32, #tpu.memory_space<vmem>>, vector<1x8x128xf32>
    %125 = vector.shape_cast %124 : vector<1x8x128xf32> to vector<8x128xf32>
    %126 = arith.truncf %118 : vector<8x128xf32> to vector<8x128xbf16>
    %cst_74 = arith.constant dense<0.000000e+00> : vector<8x128xf32>
    %127 = tpu.matmul %126, %109, %cst_74 {dimension_numbers = #tpu.dot_dimension_numbers<[1], [0], [0], [1], [0, 0, 1, 1], [], []>} : vector<8x128xbf16>, vector<128x128xbf16>, vector<8x128xf32> -> vector<8x128xf32>
    %128 = arith.addf %125, %127 : vector<8x128xf32>
    %129 = math.tanh %128 : vector<8x128xf32>
    %130 = arith.index_cast %c1_i32_71 : i32 to index
    %c0_75 = arith.constant 0 : index
    %c0_76 = arith.constant 0 : index
    %131 = vector.load %arg6[%130, %c0_75, %c0_76] : memref<8x8x128xf32, #tpu.memory_space<vmem>>, vector<1x8x128xf32>
    %132 = vector.shape_cast %131 : vector<1x8x128xf32> to vector<8x128xf32>
    %133 = vector.shape_cast %129 : vector<8x128xf32> to vector<1x8x128xf32>
    tpu.vector_store %arg6[%130, %c0_75, %c0_76], %133 {strides = array<i32>} : memref<8x8x128xf32, #tpu.memory_space<vmem>>, vector<1x8x128xf32>,
    %c2_i32_77 = arith.constant 2 : i32
    %134 = arith.index_cast %c2_i32_77 : i32 to index
    %c0_78 = arith.constant 0 : index
    %c0_79 = arith.constant 0 : index
    %135 = vector.load %arg9[%134, %c0_78, %c0_79] : memref<8x8x128xf32, #tpu.memory_space<vmem>>, vector<1x8x128xf32>
    %136 = vector.shape_cast %135 : vector<1x8x128xf32> to vector<8x128xf32>
    %137 = arith.truncf %129 : vector<8x128xf32> to vector<8x128xbf16>
    %cst_80 = arith.constant dense<0.000000e+00> : vector<8x128xf32>
    %138 = tpu.matmul %137, %109, %cst_80 {dimension_numbers = #tpu.dot_dimension_numbers<[1], [0], [0], [1], [0, 0, 1, 1], [], []>} : vector<8x128xbf16>, vector<128x128xbf16>, vector<8x128xf32> -> vector<8x128xf32>
    %139 = arith.addf %136, %138 : vector<8x128xf32>
    %140 = math.tanh %139 : vector<8x128xf32>
    %141 = arith.index_cast %c2_i32_77 : i32 to index
    %c0_81 = arith.constant 0 : index
    %c0_82 = arith.constant 0 : index
    %142 = vector.load %arg6[%141, %c0_81, %c0_82] : memref<8x8x128xf32, #tpu.memory_space<vmem>>, vector<1x8x128xf32>
    %143 = vector.shape_cast %142 : vector<1x8x128xf32> to vector<8x128xf32>
    %144 = vector.shape_cast %140 : vector<8x128xf32> to vector<1x8x128xf32>
    tpu.vector_store %arg6[%141, %c0_81, %c0_82], %144 {strides = array<i32>} : memref<8x8x128xf32, #tpu.memory_space<vmem>>, vector<1x8x128xf32>,
    %c3_i32_83 = arith.constant 3 : i32
    %145 = arith.index_cast %c3_i32_83 : i32 to index
    %c0_84 = arith.constant 0 : index
    %c0_85 = arith.constant 0 : index
    %146 = vector.load %arg9[%145, %c0_84, %c0_85] : memref<8x8x128xf32, #tpu.memory_space<vmem>>, vector<1x8x128xf32>
    %147 = vector.shape_cast %146 : vector<1x8x128xf32> to vector<8x128xf32>
    %148 = arith.truncf %140 : vector<8x128xf32> to vector<8x128xbf16>
    %cst_86 = arith.constant dense<0.000000e+00> : vector<8x128xf32>
    %149 = tpu.matmul %148, %109, %cst_86 {dimension_numbers = #tpu.dot_dimension_numbers<[1], [0], [0], [1], [0, 0, 1, 1], [], []>} : vector<8x128xbf16>, vector<128x128xbf16>, vector<8x128xf32> -> vector<8x128xf32>
    %150 = arith.addf %147, %149 : vector<8x128xf32>
    %151 = math.tanh %150 : vector<8x128xf32>
    %152 = arith.index_cast %c3_i32_83 : i32 to index
    %c0_87 = arith.constant 0 : index
    %c0_88 = arith.constant 0 : index
    %153 = vector.load %arg6[%152, %c0_87, %c0_88] : memref<8x8x128xf32, #tpu.memory_space<vmem>>, vector<1x8x128xf32>
    %154 = vector.shape_cast %153 : vector<1x8x128xf32> to vector<8x128xf32>
    %155 = vector.shape_cast %151 : vector<8x128xf32> to vector<1x8x128xf32>
    tpu.vector_store %arg6[%152, %c0_87, %c0_88], %155 {strides = array<i32>} : memref<8x8x128xf32, #tpu.memory_space<vmem>>, vector<1x8x128xf32>,
    %c4_i32_89 = arith.constant 4 : i32
    %156 = arith.index_cast %c4_i32_89 : i32 to index
    %c0_90 = arith.constant 0 : index
    %c0_91 = arith.constant 0 : index
    %157 = vector.load %arg9[%156, %c0_90, %c0_91] : memref<8x8x128xf32, #tpu.memory_space<vmem>>, vector<1x8x128xf32>
    %158 = vector.shape_cast %157 : vector<1x8x128xf32> to vector<8x128xf32>
    %159 = arith.truncf %151 : vector<8x128xf32> to vector<8x128xbf16>
    %cst_92 = arith.constant dense<0.000000e+00> : vector<8x128xf32>
    %160 = tpu.matmul %159, %109, %cst_92 {dimension_numbers = #tpu.dot_dimension_numbers<[1], [0], [0], [1], [0, 0, 1, 1], [], []>} : vector<8x128xbf16>, vector<128x128xbf16>, vector<8x128xf32> -> vector<8x128xf32>
    %161 = arith.addf %158, %160 : vector<8x128xf32>
    %162 = math.tanh %161 : vector<8x128xf32>
    %163 = arith.index_cast %c4_i32_89 : i32 to index
    %c0_93 = arith.constant 0 : index
    %c0_94 = arith.constant 0 : index
    %164 = vector.load %arg6[%163, %c0_93, %c0_94] : memref<8x8x128xf32, #tpu.memory_space<vmem>>, vector<1x8x128xf32>
    %165 = vector.shape_cast %164 : vector<1x8x128xf32> to vector<8x128xf32>
    %166 = vector.shape_cast %162 : vector<8x128xf32> to vector<1x8x128xf32>
    tpu.vector_store %arg6[%163, %c0_93, %c0_94], %166 {strides = array<i32>} : memref<8x8x128xf32, #tpu.memory_space<vmem>>, vector<1x8x128xf32>,
    %c5_i32_95 = arith.constant 5 : i32
    %167 = arith.index_cast %c5_i32_95 : i32 to index
    %c0_96 = arith.constant 0 : index
    %c0_97 = arith.constant 0 : index
    %168 = vector.load %arg9[%167, %c0_96, %c0_97] : memref<8x8x128xf32, #tpu.memory_space<vmem>>, vector<1x8x128xf32>
    %169 = vector.shape_cast %168 : vector<1x8x128xf32> to vector<8x128xf32>
    %170 = arith.truncf %162 : vector<8x128xf32> to vector<8x128xbf16>
    %cst_98 = arith.constant dense<0.000000e+00> : vector<8x128xf32>
    %171 = tpu.matmul %170, %109, %cst_98 {dimension_numbers = #tpu.dot_dimension_numbers<[1], [0], [0], [1], [0, 0, 1, 1], [], []>} : vector<8x128xbf16>, vector<128x128xbf16>, vector<8x128xf32> -> vector<8x128xf32>
    %172 = arith.addf %169, %171 : vector<8x128xf32>
    %173 = math.tanh %172 : vector<8x128xf32>
    %174 = arith.index_cast %c5_i32_95 : i32 to index
    %c0_99 = arith.constant 0 : index
    %c0_100 = arith.constant 0 : index
    %175 = vector.load %arg6[%174, %c0_99, %c0_100] : memref<8x8x128xf32, #tpu.memory_space<vmem>>, vector<1x8x128xf32>
    %176 = vector.shape_cast %175 : vector<1x8x128xf32> to vector<8x128xf32>
    %177 = vector.shape_cast %173 : vector<8x128xf32> to vector<1x8x128xf32>
    tpu.vector_store %arg6[%174, %c0_99, %c0_100], %177 {strides = array<i32>} : memref<8x8x128xf32, #tpu.memory_space<vmem>>, vector<1x8x128xf32>,
    %c6_i32_101 = arith.constant 6 : i32
    %178 = arith.index_cast %c6_i32_101 : i32 to index
    %c0_102 = arith.constant 0 : index
    %c0_103 = arith.constant 0 : index
    %179 = vector.load %arg9[%178, %c0_102, %c0_103] : memref<8x8x128xf32, #tpu.memory_space<vmem>>, vector<1x8x128xf32>
    %180 = vector.shape_cast %179 : vector<1x8x128xf32> to vector<8x128xf32>
    %181 = arith.truncf %173 : vector<8x128xf32> to vector<8x128xbf16>
    %cst_104 = arith.constant dense<0.000000e+00> : vector<8x128xf32>
    %182 = tpu.matmul %181, %109, %cst_104 {dimension_numbers = #tpu.dot_dimension_numbers<[1], [0], [0], [1], [0, 0, 1, 1], [], []>} : vector<8x128xbf16>, vector<128x128xbf16>, vector<8x128xf32> -> vector<8x128xf32>
    %183 = arith.addf %180, %182 : vector<8x128xf32>
    %184 = math.tanh %183 : vector<8x128xf32>
    %185 = arith.index_cast %c6_i32_101 : i32 to index
    %c0_105 = arith.constant 0 : index
    %c0_106 = arith.constant 0 : index
    %186 = vector.load %arg6[%185, %c0_105, %c0_106] : memref<8x8x128xf32, #tpu.memory_space<vmem>>, vector<1x8x128xf32>
    %187 = vector.shape_cast %186 : vector<1x8x128xf32> to vector<8x128xf32>
    %188 = vector.shape_cast %184 : vector<8x128xf32> to vector<1x8x128xf32>
    tpu.vector_store %arg6[%185, %c0_105, %c0_106], %188 {strides = array<i32>} : memref<8x8x128xf32, #tpu.memory_space<vmem>>, vector<1x8x128xf32>,
    %c7_i32_107 = arith.constant 7 : i32
    %189 = arith.index_cast %c7_i32_107 : i32 to index
    %c0_108 = arith.constant 0 : index
    %c0_109 = arith.constant 0 : index
    %190 = vector.load %arg9[%189, %c0_108, %c0_109] : memref<8x8x128xf32, #tpu.memory_space<vmem>>, vector<1x8x128xf32>
    %191 = vector.shape_cast %190 : vector<1x8x128xf32> to vector<8x128xf32>
    %192 = arith.truncf %184 : vector<8x128xf32> to vector<8x128xbf16>
    %cst_110 = arith.constant dense<0.000000e+00> : vector<8x128xf32>
    %193 = tpu.matmul %192, %109, %cst_110 {dimension_numbers = #tpu.dot_dimension_numbers<[1], [0], [0], [1], [0, 0, 1, 1], [], []>} : vector<8x128xbf16>, vector<128x128xbf16>, vector<8x128xf32> -> vector<8x128xf32>
    %194 = arith.addf %191, %193 : vector<8x128xf32>
    %195 = math.tanh %194 : vector<8x128xf32>
    %196 = arith.index_cast %c7_i32_107 : i32 to index
    %c0_111 = arith.constant 0 : index
    %c0_112 = arith.constant 0 : index
    %197 = vector.load %arg6[%196, %c0_111, %c0_112] : memref<8x8x128xf32, #tpu.memory_space<vmem>>, vector<1x8x128xf32>
    %198 = vector.shape_cast %197 : vector<1x8x128xf32> to vector<8x128xf32>
    %199 = vector.shape_cast %195 : vector<8x128xf32> to vector<1x8x128xf32>
    tpu.vector_store %arg6[%196, %c0_111, %c0_112], %199 {strides = array<i32>} : memref<8x8x128xf32, #tpu.memory_space<vmem>>, vector<1x8x128xf32>,
    %c8_i32_113 = arith.constant 8 : i32
    %c1_114 = arith.constant 1 : index
    %c0_115 = arith.constant 0 : index
    %c0_116 = arith.constant 0 : index
    %200 = vector.load %arg7[%c1_114, %c0_115, %c0_116] : memref<2x8x128xf32, #tpu.memory_space<vmem>>, vector<1x8x128xf32>
    %201 = vector.shape_cast %200 : vector<1x8x128xf32> to vector<8x128xf32>
    %202 = vector.shape_cast %195 : vector<8x128xf32> to vector<1x8x128xf32>
    tpu.vector_store %arg7[%c1_114, %c0_115, %c0_116], %202 {strides = array<i32>} : memref<2x8x128xf32, #tpu.memory_space<vmem>>, vector<1x8x128xf32>,
    return
  }
  func.func @transform_0(%arg0: i32) -> (i32, i32, i32) {
    %c0_i32 = arith.constant 0 : i32
    %c0_i32_0 = arith.constant 0 : i32
    %c0_i32_1 = arith.constant 0 : i32
    return %c0_i32, %arg0, %c0_i32_0 : i32, i32, i32
  }
  func.func @transform_1(%arg0: i32) -> (i32, i32, i32) {
    %c0_i32 = arith.constant 0 : i32
    %c0_i32_0 = arith.constant 0 : i32
    %c0_i32_1 = arith.constant 0 : i32
    return %c0_i32, %arg0, %c0_i32_0 : i32, i32, i32
  }
  func.func @transform_2(%arg0: i32) -> (i32, i32, i32) {
    %c0_i32 = arith.constant 0 : i32
    %c0_i32_0 = arith.constant 0 : i32
    %c0_i32_1 = arith.constant 0 : i32
    %c0_i32_2 = arith.constant 0 : i32
    return %c0_i32, %c0_i32_0, %c0_i32_1 : i32, i32, i32
  }
  func.func @transform_3(%arg0: i32) -> (i32, i32, i32) {
    %c0_i32 = arith.constant 0 : i32
    %c0_i32_0 = arith.constant 0 : i32
    %c0_i32_1 = arith.constant 0 : i32
    %c0_i32_2 = arith.constant 0 : i32
    return %c0_i32, %c0_i32_0, %c0_i32_1 : i32, i32, i32
  }
  func.func @transform_4(%arg0: i32) -> (i32, i32, i32) {
    %c0_i32 = arith.constant 0 : i32
    %c0_i32_0 = arith.constant 0 : i32
    %c0_i32_1 = arith.constant 0 : i32
    %c0_i32_2 = arith.constant 0 : i32
    return %c0_i32, %c0_i32_0, %c0_i32_1 : i32, i32, i32
  }
  func.func @transform_5(%arg0: i32) -> (i32, i32, i32) {
    %c0_i32 = arith.constant 0 : i32
    %c0_i32_0 = arith.constant 0 : i32
    %c0_i32_1 = arith.constant 0 : i32
    return %c0_i32, %arg0, %c0_i32_0 : i32, i32, i32
  }
  func.func @transform_6(%arg0: i32) -> (i32, i32, i32) {
    %c0_i32 = arith.constant 0 : i32
    %c0_i32_0 = arith.constant 0 : i32
    %c0_i32_1 = arith.constant 0 : i32
    return %c0_i32, %arg0, %c0_i32_0 : i32, i32, i32
  }
}

</mosaic_0001>

<llo_original>
// kernel: vanilla_rnn_forward.1
$region0: #{vanilla_rnn_forward.1}
  #allocation0 [shape = 'u32[]', space=smem, size = 0x4, offset = 0x4, fixed_abs, tag = 'smem constant byte address 0x4 - core index']
  #allocation1 [shape = 'u32[144,128]{1,0:T(1,128)}', space=vmem, size = 0x12000, scoped, tag = 'internal scratch']
  #allocation2 [shape = 'f32[8,8,128]{2,1,0:T(8,128)}', space=vmem, size = 0x8000, scoped, tag = 'scratch operand']
  #allocation3 [shape = 'f32[8,8,128]{2,1,0:T(8,128)}', space=vmem, size = 0x8000, scoped, tag = 'scratch operand']
  %s0 = inlined_call_operand.vmem [shape: f32[8,8,128], index: 0, kind: input, shape index: {}]
  %s1 = inlined_call_operand.vmem [shape: f32[2,8,128], index: 1, kind: input, shape index: {}]
  %s2 = inlined_call_operand.vmem [shape: bf16[1,128,128], index: 2, kind: input, shape index: {}]
  %s3 = inlined_call_operand.vmem [shape: bf16[2,128,128], index: 3, kind: input, shape index: {}]
  %s4 = inlined_call_operand.vmem [shape: f32[2,1,128], index: 4, kind: input, shape index: {}]
  %s5 = inlined_call_operand.vmem [shape: f32[8,8,128], index: 5, kind: output, shape index: {0}]
  %s6 = inlined_call_operand.vmem [shape: f32[2,8,128], index: 6, kind: output, shape index: {1}]
  %7 = xla_tuple %s5, %s6
  %s8 = sld [smem:[#allocation0]]
  $region38: #{vanilla_rnn_forward.1} parent=0
    _
  %s10 = ssub.s32 1, %s8
  %s11 = scalar_select 0, %s10, %s8
  // Predicated region
  $region2: #{vanilla_rnn_forward.1} parent=0 // pred_check
    _
  $region3: #{vanilla_rnn_forward.1} parent=0 // pred_check_branch
    %13 = sbr.rel (0) target = $region5
  $region4: #{vanilla_rnn_forward.1} parent=0 // pred_region
    _
  $region5: #{vanilla_rnn_forward.1} parent=0 // pred_fallthru
    _
  // Predicated region
  $region6: #{vanilla_rnn_forward.1} parent=0 // pred_check
    _
  $region7: #{vanilla_rnn_forward.1} parent=0 // pred_check_branch
    %15 = sbr.rel (0) target = $region9
  $region8: #{vanilla_rnn_forward.1} parent=0 // pred_region
    _
  $region9: #{vanilla_rnn_forward.1} parent=0 // pred_fallthru
    _
  // Predicated region
  $region10: #{vanilla_rnn_forward.1} parent=0 // pred_check
    _
  $region11: #{vanilla_rnn_forward.1} parent=0 // pred_check_branch
    %17 = sbr.rel (0) target = $region13
  $region12: #{vanilla_rnn_forward.1} parent=0 // pred_region
    _
  $region13: #{vanilla_rnn_forward.1} parent=0 // pred_fallthru
    _
  // Predicated region
  $region14: #{vanilla_rnn_forward.1} parent=0 // pred_check
    _
  $region15: #{vanilla_rnn_forward.1} parent=0 // pred_check_branch
    %19 = sbr.rel (0) target = $region17
  $region16: #{vanilla_rnn_forward.1} parent=0 // pred_region
    _
  $region17: #{vanilla_rnn_forward.1} parent=0 // pred_fallthru
    _
  // Predicated region
  $region18: #{vanilla_rnn_forward.1} parent=0 // pred_check
    _
  $region19: #{vanilla_rnn_forward.1} parent=0 // pred_check_branch
    %21 = sbr.rel (0) target = $region21
  $region20: #{vanilla_rnn_forward.1} parent=0 // pred_region
    _
  $region21: #{vanilla_rnn_forward.1} parent=0 // pred_fallthru
    _
  %v23 = vld [vmem:[%s3] sm:$0xf]
  %v24 = vld [vmem:[%s3 + $0x4] sm:$0xf]
  %v25 = vld [vmem:[%s3 + $0x8] sm:$0xf]
  %v26 = vld [vmem:[%s3 + $0xc] sm:$0xf]
  %v27 = vld [vmem:[%s3 + $0x10] sm:$0xf]
  %v28 = vld [vmem:[%s3 + $0x14] sm:$0xf]
  %v29 = vld [vmem:[%s3 + $0x18] sm:$0xf]
  %v30 = vld [vmem:[%s3 + $0x1c] sm:$0xf]
  %v31 = vld [vmem:[%s3 + $0x20] sm:$0xf]
  %v32 = vld [vmem:[%s3 + $0x24] sm:$0xf]
  %v33 = vld [vmem:[%s3 + $0x28] sm:$0xf]
  %v34 = vld [vmem:[%s3 + $0x2c] sm:$0xf]
  %v35 = vld [vmem:[%s3 + $0x30] sm:$0xf]
  %v36 = vld [vmem:[%s3 + $0x34] sm:$0xf]
  %v37 = vld [vmem:[%s3 + $0x38] sm:$0xf]
  %v38 = vld [vmem:[%s3 + $0x3c] sm:$0xf]
  %v39 = vld [vmem:[%s1] sm:$0xff]
  %v40 = vld [vmem:[%s0] sm:$0xff]
  %v41 = vpack.c.bf16 %v39, %v39
  %v58 = vunpack.c.l.b16 %v23
  %v59 = vunpack.c.l.b16 %v24
  %v60 = vunpack.c.l.b16 %v25
  %v61 = vunpack.c.l.b16 %v26
  %v62 = vunpack.c.l.b16 %v27
  %v63 = vunpack.c.l.b16 %v28
  %v64 = vunpack.c.l.b16 %v29
  %v65 = vunpack.c.l.b16 %v30
  %v66 = vunpack.c.l.b16 %v31
  %v67 = vunpack.c.l.b16 %v32
  %v68 = vunpack.c.l.b16 %v33
  %v69 = vunpack.c.l.b16 %v34
  %v70 = vunpack.c.l.b16 %v35
  %v71 = vunpack.c.l.b16 %v36
  %v72 = vunpack.c.l.b16 %v37
  %v73 = vunpack.c.l.b16 %v38
  %v74 = vpack.c.b16 %v59, %v58
  %v75 = vpack.c.b16 %v61, %v60
  %v76 = vpack.c.b16 %v63, %v62
  %v77 = vpack.c.b16 %v65, %v64
  %v78 = vpack.c.b16 %v67, %v66
  %v79 = vpack.c.b16 %v69, %v68
  %v80 = vpack.c.b16 %v71, %v70
  %v81 = vpack.c.b16 %v73, %v72
  %90 = vmatprep.subr.bf16.mxu0 0
  %91 = vmatpush1.bf16.msra.mxu0 %v74
  %92 = vmatprep.subr.bf16.mxu0 0
  %93 = vmatpush1.bf16.msra.mxu0 %v75
  %94 = vmatprep.subr.bf16.mxu0 0
  %95 = vmatpush1.bf16.msra.mxu0 %v76
  %96 = vmatprep.subr.bf16.mxu0 0
  %97 = vmatpush1.bf16.msra.mxu0 %v77
  %98 = vmatprep.subr.bf16.mxu0 0
  %99 = vmatpush1.bf16.msra.mxu0 %v78
  %100 = vmatprep.subr.bf16.mxu0 0
  %101 = vmatpush1.bf16.msra.mxu0 %v79
  %102 = vmatprep.subr.bf16.mxu0 0
  %103 = vmatpush1.bf16.msra.mxu0 %v80
  %104 = vmatprep.subr.bf16.mxu0 0
  %105 = vmatpush1.bf16.msra.mxu0 %v81
  %106 = vmatprep.subr.bf16.mxu0 0
  %107 = vmatpush1.bf16.msra.mxu0 0
  %108 = vmatprep.subr.bf16.mxu0 0
  %109 = vmatpush1.bf16.msra.mxu0 0
  %110 = vmatprep.subr.bf16.mxu0 0
  %111 = vmatpush1.bf16.msra.mxu0 0
  %112 = vmatprep.subr.bf16.mxu0 0
  %113 = vmatpush1.bf16.msra.mxu0 0
  %114 = vmatprep.subr.bf16.mxu0 0
  %115 = vmatpush1.bf16.msra.mxu0 0
  %116 = vmatprep.subr.bf16.mxu0 0
  %117 = vmatpush1.bf16.msra.mxu0 0
  %118 = vmatprep.subr.bf16.mxu0 0
  %119 = vmatpush1.bf16.msra.mxu0 0
  %120 = vmatprep.subr.bf16.mxu0 0
  %121 = vmatpush1.bf16.msra.mxu0 0
  %122 = vmatprep.mubr.bf16.mxu0 0
  %123 = vmatmul.mubr.bf16.gmra.mrb[0].mxu0 %v41
  %v124 = vpop.f32.mrb[0].mxu0
  %v125 = vadd.f32 0.0, %v124
  %v126 = vpop.f32.mrb[0].mxu0
  %v127 = vpop.f32.mrb[0].mxu0
  %v128 = vpop.f32.mrb[0].mxu0
  %129 = vdwg.mxu0
  %v130 = vadd.f32 %v40, %v125
  %v131 = vtanh.pop %v130
  %132 = vst [vmem:[#allocation2] sm:$0xff] %v131
  %s133 = scalar_lea.vmem %s0, 8
  %v134 = vld [vmem:[%s133] sm:$0xff]
  %v135 = vpack.c.bf16 %v131, %v131
  %136 = vmatprep.subr.bf16.mxu0 0
  %137 = vmatpush1.bf16.msra.mxu0 %v74
  %138 = vmatprep.subr.bf16.mxu0 0
  %139 = vmatpush1.bf16.msra.mxu0 %v75
  %140 = vmatprep.subr.bf16.mxu0 0
  %141 = vmatpush1.bf16.msra.mxu0 %v76
  %142 = vmatprep.subr.bf16.mxu0 0
  %143 = vmatpush1.bf16.msra.mxu0 %v77
  %144 = vmatprep.subr.bf16.mxu0 0
  %145 = vmatpush1.bf16.msra.mxu0 %v78
  %146 = vmatprep.subr.bf16.mxu0 0
  %147 = vmatpush1.bf16.msra.mxu0 %v79
  %148 = vmatprep.subr.bf16.mxu0 0
  %149 = vmatpush1.bf16.msra.mxu0 %v80
  %150 = vmatprep.subr.bf16.mxu0 0
  %151 = vmatpush1.bf16.msra.mxu0 %v81
  %152 = vmatprep.subr.bf16.mxu0 0
  %153 = vmatpush1.bf16.msra.mxu0 0
  %154 = vmatprep.subr.bf16.mxu0 0
  %155 = vmatpush1.bf16.msra.mxu0 0
  %156 = vmatprep.subr.bf16.mxu0 0
  %157 = vmatpush1.bf16.msra.mxu0 0
  %158 = vmatprep.subr.bf16.mxu0 0
  %159 = vmatpush1.bf16.msra.mxu0 0
  %160 = vmatprep.subr.bf16.mxu0 0
  %161 = vmatpush1.bf16.msra.mxu0 0
  %162 = vmatprep.subr.bf16.mxu0 0
  %163 = vmatpush1.bf16.msra.mxu0 0
  %164 = vmatprep.subr.bf16.mxu0 0
  %165 = vmatpush1.bf16.msra.mxu0 0
  %166 = vmatprep.subr.bf16.mxu0 0
  %167 = vmatpush1.bf16.msra.mxu0 0
  %168 = vmatprep.mubr.bf16.mxu0 0
  %169 = vmatmul.mubr.bf16.gmra.mrb[0].mxu0 %v135
  %v170 = vpop.f32.mrb[0].mxu0
  %v171 = vadd.f32 0.0, %v170
  %v172 = vpop.f32.mrb[0].mxu0
  %v173 = vpop.f32.mrb[0].mxu0
  %v174 = vpop.f32.mrb[0].mxu0
  %175 = vdwg.mxu0
  %v176 = vadd.f32 %v134, %v171
  %v177 = vtanh.pop %v176
  %s178 = scalar_lea.vmem [#allocation2], 8
  %179 = vst [vmem:[%s178] sm:$0xff] %v177
  %s180 = scalar_lea.vmem %s0, 16
  %v181 = vld [vmem:[%s180] sm:$0xff]
  %v182 = vpack.c.bf16 %v177, %v177
  %183 = vmatprep.subr.bf16.mxu0 0
  %184 = vmatpush1.bf16.msra.mxu0 %v74
  %185 = vmatprep.subr.bf16.mxu0 0
  %186 = vmatpush1.bf16.msra.mxu0 %v75
  %187 = vmatprep.subr.bf16.mxu0 0
  %188 = vmatpush1.bf16.msra.mxu0 %v76
  %189 = vmatprep.subr.bf16.mxu0 0
  %190 = vmatpush1.bf16.msra.mxu0 %v77
  %191 = vmatprep.subr.bf16.mxu0 0
  %192 = vmatpush1.bf16.msra.mxu0 %v78
  %193 = vmatprep.subr.bf16.mxu0 0
  %194 = vmatpush1.bf16.msra.mxu0 %v79
  %195 = vmatprep.subr.bf16.mxu0 0
  %196 = vmatpush1.bf16.msra.mxu0 %v80
  %197 = vmatprep.subr.bf16.mxu0 0
  %198 = vmatpush1.bf16.msra.mxu0 %v81
  %199 = vmatprep.subr.bf16.mxu0 0
  %200 = vmatpush1.bf16.msra.mxu0 0
  %201 = vmatprep.subr.bf16.mxu0 0
  %202 = vmatpush1.bf16.msra.mxu0 0
  %203 = vmatprep.subr.bf16.mxu0 0
  %204 = vmatpush1.bf16.msra.mxu0 0
  %205 = vmatprep.subr.bf16.mxu0 0
  %206 = vmatpush1.bf16.msra.mxu0 0
  %207 = vmatprep.subr.bf16.mxu0 0
  %208 = vmatpush1.bf16.msra.mxu0 0
  %209 = vmatprep.subr.bf16.mxu0 0
  %210 = vmatpush1.bf16.msra.mxu0 0
  %211 = vmatprep.subr.bf16.mxu0 0
  %212 = vmatpush1.bf16.msra.mxu0 0
  %213 = vmatprep.subr.bf16.mxu0 0
  %214 = vmatpush1.bf16.msra.mxu0 0
  %215 = vmatprep.mubr.bf16.mxu0 0
  %216 = vmatmul.mubr.bf16.gmra.mrb[0].mxu0 %v182
  %v217 = vpop.f32.mrb[0].mxu0
  %v218 = vadd.f32 0.0, %v217
  %v219 = vpop.f32.mrb[0].mxu0
  %v220 = vpop.f32.mrb[0].mxu0
  %v221 = vpop.f32.mrb[0].mxu0
  %222 = vdwg.mxu0
  %v223 = vadd.f32 %v181, %v218
  %v224 = vtanh.pop %v223
  %s225 = scalar_lea.vmem [#allocation2], 16
  %226 = vst [vmem:[%s225] sm:$0xff] %v224
  %s227 = scalar_lea.vmem %s0, 24
  %v228 = vld [vmem:[%s227] sm:$0xff]
  %v229 = vpack.c.bf16 %v224, %v224
  %230 = vmatprep.subr.bf16.mxu0 0
  %231 = vmatpush1.bf16.msra.mxu0 %v74
  %232 = vmatprep.subr.bf16.mxu0 0
  %233 = vmatpush1.bf16.msra.mxu0 %v75
  %234 = vmatprep.subr.bf16.mxu0 0
  %235 = vmatpush1.bf16.msra.mxu0 %v76
  %236 = vmatprep.subr.bf16.mxu0 0
  %237 = vmatpush1.bf16.msra.mxu0 %v77
  %238 = vmatprep.subr.bf16.mxu0 0
  %239 = vmatpush1.bf16.msra.mxu0 %v78
  %240 = vmatprep.subr.bf16.mxu0 0
  %241 = vmatpush1.bf16.msra.mxu0 %v79
  %242 = vmatprep.subr.bf16.mxu0 0
  %243 = vmatpush1.bf16.msra.mxu0 %v80
  %244 = vmatprep.subr.bf16.mxu0 0
  %245 = vmatpush1.bf16.msra.mxu0 %v81
  %246 = vmatprep.subr.bf16.mxu0 0
  %247 = vmatpush1.bf16.msra.mxu0 0
  %248 = vmatprep.subr.bf16.mxu0 0
  %249 = vmatpush1.bf16.msra.mxu0 0
  %250 = vmatprep.subr.bf16.mxu0 0
  %251 = vmatpush1.bf16.msra.mxu0 0
  %252 = vmatprep.subr.bf16.mxu0 0
  %253 = vmatpush1.bf16.msra.mxu0 0
  %254 = vmatprep.subr.bf16.mxu0 0
  %255 = vmatpush1.bf16.msra.mxu0 0
  %256 = vmatprep.subr.bf16.mxu0 0
  %257 = vmatpush1.bf16.msra.mxu0 0
  %258 = vmatprep.subr.bf16.mxu0 0
  %259 = vmatpush1.bf16.msra.mxu0 0
  %260 = vmatprep.subr.bf16.mxu0 0
  %261 = vmatpush1.bf16.msra.mxu0 0
  %262 = vmatprep.mubr.bf16.mxu0 0
  %263 = vmatmul.mubr.bf16.gmra.mrb[0].mxu0 %v229
  %v264 = vpop.f32.mrb[0].mxu0
  %v265 = vadd.f32 0.0, %v264
  %v266 = vpop.f32.mrb[0].mxu0
  %v267 = vpop.f32.mrb[0].mxu0
  %v268 = vpop.f32.mrb[0].mxu0
  %269 = vdwg.mxu0
  %v270 = vadd.f32 %v228, %v265
  %v271 = vtanh.pop %v270
  %s272 = scalar_lea.vmem [#allocation2], 24
  %273 = vst [vmem:[%s272] sm:$0xff] %v271
  %s274 = scalar_lea.vmem %s0, 32
  %v275 = vld [vmem:[%s274] sm:$0xff]
  %v276 = vpack.c.bf16 %v271, %v271
  %277 = vmatprep.subr.bf16.mxu0 0
  %278 = vmatpush1.bf16.msra.mxu0 %v74
  %279 = vmatprep.subr.bf16.mxu0 0
  %280 = vmatpush1.bf16.msra.mxu0 %v75
  %281 = vmatprep.subr.bf16.mxu0 0
  %282 = vmatpush1.bf16.msra.mxu0 %v76
  %283 = vmatprep.subr.bf16.mxu0 0
  %284 = vmatpush1.bf16.msra.mxu0 %v77
  %285 = vmatprep.subr.bf16.mxu0 0
  %286 = vmatpush1.bf16.msra.mxu0 %v78
  %287 = vmatprep.subr.bf16.mxu0 0
  %288 = vmatpush1.bf16.msra.mxu0 %v79
  %289 = vmatprep.subr.bf16.mxu0 0
  %290 = vmatpush1.bf16.msra.mxu0 %v80
  %291 = vmatprep.subr.bf16.mxu0 0
  %292 = vmatpush1.bf16.msra.mxu0 %v81
  %293 = vmatprep.subr.bf16.mxu0 0
  %294 = vmatpush1.bf16.msra.mxu0 0
  %295 = vmatprep.subr.bf16.mxu0 0
  %296 = vmatpush1.bf16.msra.mxu0 0
  %297 = vmatprep.subr.bf16.mxu0 0
  %298 = vmatpush1.bf16.msra.mxu0 0
  %299 = vmatprep.subr.bf16.mxu0 0
  %300 = vmatpush1.bf16.msra.mxu0 0
  %301 = vmatprep.subr.bf16.mxu0 0
  %302 = vmatpush1.bf16.msra.mxu0 0
  %303 = vmatprep.subr.bf16.mxu0 0
  %304 = vmatpush1.bf16.msra.mxu0 0
  %305 = vmatprep.subr.bf16.mxu0 0
  %306 = vmatpush1.bf16.msra.mxu0 0
  %307 = vmatprep.subr.bf16.mxu0 0
  %308 = vmatpush1.bf16.msra.mxu0 0
  %309 = vmatprep.mubr.bf16.mxu0 0
  %310 = vmatmul.mubr.bf16.gmra.mrb[0].mxu0 %v276
  %v311 = vpop.f32.mrb[0].mxu0
  %v312 = vadd.f32 0.0, %v311
  %v313 = vpop.f32.mrb[0].mxu0
  %v314 = vpop.f32.mrb[0].mxu0
  %v315 = vpop.f32.mrb[0].mxu0
  %316 = vdwg.mxu0
  %v317 = vadd.f32 %v275, %v312
  %v318 = vtanh.pop %v317
  %s319 = scalar_lea.vmem [#allocation2], 32
  %320 = vst [vmem:[%s319] sm:$0xff] %v318
  %s321 = scalar_lea.vmem %s0, 40
  %v322 = vld [vmem:[%s321] sm:$0xff]
  %v323 = vpack.c.bf16 %v318, %v318
  %324 = vmatprep.subr.bf16.mxu0 0
  %325 = vmatpush1.bf16.msra.mxu0 %v74
  %326 = vmatprep.subr.bf16.mxu0 0
  %327 = vmatpush1.bf16.msra.mxu0 %v75
  %328 = vmatprep.subr.bf16.mxu0 0
  %329 = vmatpush1.bf16.msra.mxu0 %v76
  %330 = vmatprep.subr.bf16.mxu0 0
  %331 = vmatpush1.bf16.msra.mxu0 %v77
  %332 = vmatprep.subr.bf16.mxu0 0
  %333 = vmatpush1.bf16.msra.mxu0 %v78
  %334 = vmatprep.subr.bf16.mxu0 0
  %335 = vmatpush1.bf16.msra.mxu0 %v79
  %336 = vmatprep.subr.bf16.mxu0 0
  %337 = vmatpush1.bf16.msra.mxu0 %v80
  %338 = vmatprep.subr.bf16.mxu0 0
  %339 = vmatpush1.bf16.msra.mxu0 %v81
  %340 = vmatprep.subr.bf16.mxu0 0
  %341 = vmatpush1.bf16.msra.mxu0 0
  %342 = vmatprep.subr.bf16.mxu0 0
  %343 = vmatpush1.bf16.msra.mxu0 0
  %344 = vmatprep.subr.bf16.mxu0 0
  %345 = vmatpush1.bf16.msra.mxu0 0
  %346 = vmatprep.subr.bf16.mxu0 0
  %347 = vmatpush1.bf16.msra.mxu0 0
  %348 = vmatprep.subr.bf16.mxu0 0
  %349 = vmatpush1.bf16.msra.mxu0 0
  %350 = vmatprep.subr.bf16.mxu0 0
  %351 = vmatpush1.bf16.msra.mxu0 0
  %352 = vmatprep.subr.bf16.mxu0 0
  %353 = vmatpush1.bf16.msra.mxu0 0
  %354 = vmatprep.subr.bf16.mxu0 0
  %355 = vmatpush1.bf16.msra.mxu0 0
  %356 = vmatprep.mubr.bf16.mxu0 0
  %357 = vmatmul.mubr.bf16.gmra.mrb[0].mxu0 %v323
  %v358 = vpop.f32.mrb[0].mxu0
  %v359 = vadd.f32 0.0, %v358
  %v360 = vpop.f32.mrb[0].mxu0
  %v361 = vpop.f32.mrb[0].mxu0
  %v362 = vpop.f32.mrb[0].mxu0
  %363 = vdwg.mxu0
  %v364 = vadd.f32 %v322, %v359
  %v365 = vtanh.pop %v364
  %s366 = scalar_lea.vmem [#allocation2], 40
  %367 = vst [vmem:[%s366] sm:$0xff] %v365
  %s368 = scalar_lea.vmem %s0, 48
  %v369 = vld [vmem:[%s368] sm:$0xff]
  %v370 = vpack.c.bf16 %v365, %v365
  %371 = vmatprep.subr.bf16.mxu0 0
  %372 = vmatpush1.bf16.msra.mxu0 %v74
  %373 = vmatprep.subr.bf16.mxu0 0
  %374 = vmatpush1.bf16.msra.mxu0 %v75
  %375 = vmatprep.subr.bf16.mxu0 0
  %376 = vmatpush1.bf16.msra.mxu0 %v76
  %377 = vmatprep.subr.bf16.mxu0 0
  %378 = vmatpush1.bf16.msra.mxu0 %v77
  %379 = vmatprep.subr.bf16.mxu0 0
  %380 = vmatpush1.bf16.msra.mxu0 %v78
  %381 = vmatprep.subr.bf16.mxu0 0
  %382 = vmatpush1.bf16.msra.mxu0 %v79
  %383 = vmatprep.subr.bf16.mxu0 0
  %384 = vmatpush1.bf16.msra.mxu0 %v80
  %385 = vmatprep.subr.bf16.mxu0 0
  %386 = vmatpush1.bf16.msra.mxu0 %v81
  %387 = vmatprep.subr.bf16.mxu0 0
  %388 = vmatpush1.bf16.msra.mxu0 0
  %389 = vmatprep.subr.bf16.mxu0 0
  %390 = vmatpush1.bf16.msra.mxu0 0
  %391 = vmatprep.subr.bf16.mxu0 0
  %392 = vmatpush1.bf16.msra.mxu0 0
  %393 = vmatprep.subr.bf16.mxu0 0
  %394 = vmatpush1.bf16.msra.mxu0 0
  %395 = vmatprep.subr.bf16.mxu0 0
  %396 = vmatpush1.bf16.msra.mxu0 0
  %397 = vmatprep.subr.bf16.mxu0 0
  %398 = vmatpush1.bf16.msra.mxu0 0
  %399 = vmatprep.subr.bf16.mxu0 0
  %400 = vmatpush1.bf16.msra.mxu0 0
  %401 = vmatprep.subr.bf16.mxu0 0
  %402 = vmatpush1.bf16.msra.mxu0 0
  %403 = vmatprep.mubr.bf16.mxu0 0
  %404 = vmatmul.mubr.bf16.gmra.mrb[0].mxu0 %v370
  %v405 = vpop.f32.mrb[0].mxu0
  %v406 = vadd.f32 0.0, %v405
  %v407 = vpop.f32.mrb[0].mxu0
  %v408 = vpop.f32.mrb[0].mxu0
  %v409 = vpop.f32.mrb[0].mxu0
  %410 = vdwg.mxu0
  %v411 = vadd.f32 %v369, %v406
  %v412 = vtanh.pop %v411
  %s413 = scalar_lea.vmem [#allocation2], 48
  %414 = vst [vmem:[%s413] sm:$0xff] %v412
  %s415 = scalar_lea.vmem %s0, 56
  %v416 = vld [vmem:[%s415] sm:$0xff]
  %v417 = vpack.c.bf16 %v412, %v412
  %418 = vmatprep.subr.bf16.mxu0 0
  %419 = vmatpush1.bf16.msra.mxu0 %v74
  %420 = vmatprep.subr.bf16.mxu0 0
  %421 = vmatpush1.bf16.msra.mxu0 %v75
  %422 = vmatprep.subr.bf16.mxu0 0
  %423 = vmatpush1.bf16.msra.mxu0 %v76
  %424 = vmatprep.subr.bf16.mxu0 0
  %425 = vmatpush1.bf16.msra.mxu0 %v77
  %426 = vmatprep.subr.bf16.mxu0 0
  %427 = vmatpush1.bf16.msra.mxu0 %v78
  %428 = vmatprep.subr.bf16.mxu0 0
  %429 = vmatpush1.bf16.msra.mxu0 %v79
  %430 = vmatprep.subr.bf16.mxu0 0
  %431 = vmatpush1.bf16.msra.mxu0 %v80
  %432 = vmatprep.subr.bf16.mxu0 0
  %433 = vmatpush1.bf16.msra.mxu0 %v81
  %434 = vmatprep.subr.bf16.mxu0 0
  %435 = vmatpush1.bf16.msra.mxu0 0
  %436 = vmatprep.subr.bf16.mxu0 0
  %437 = vmatpush1.bf16.msra.mxu0 0
  %438 = vmatprep.subr.bf16.mxu0 0
  %439 = vmatpush1.bf16.msra.mxu0 0
  %440 = vmatprep.subr.bf16.mxu0 0
  %441 = vmatpush1.bf16.msra.mxu0 0
  %442 = vmatprep.subr.bf16.mxu0 0
  %443 = vmatpush1.bf16.msra.mxu0 0
  %444 = vmatprep.subr.bf16.mxu0 0
  %445 = vmatpush1.bf16.msra.mxu0 0
  %446 = vmatprep.subr.bf16.mxu0 0
  %447 = vmatpush1.bf16.msra.mxu0 0
  %448 = vmatprep.subr.bf16.mxu0 0
  %449 = vmatpush1.bf16.msra.mxu0 0
  %450 = vmatprep.mubr.bf16.mxu0 0
  %451 = vmatmul.mubr.bf16.gmra.mrb[0].mxu0 %v417
  %v452 = vpop.f32.mrb[0].mxu0
  %v453 = vadd.f32 0.0, %v452
  %v454 = vpop.f32.mrb[0].mxu0
  %v455 = vpop.f32.mrb[0].mxu0
  %v456 = vpop.f32.mrb[0].mxu0
  %457 = vdwg.mxu0
  %v458 = vadd.f32 %v416, %v453
  %v459 = vtanh.pop %v458
  %s460 = scalar_lea.vmem [#allocation2], 56
  %461 = vst [vmem:[%s460] sm:$0xff] %v459
  %462 = vst [vmem:[%s6] sm:$0xff] %v459
  %v463 = vld [vmem:[#allocation2] sm:$0xff]
  %v464 = vld [vmem:[#allocation2 + $0x8] sm:$0xff]
  %v465 = vld [vmem:[#allocation2 + $0x10] sm:$0xff]
  %v466 = vld [vmem:[#allocation2 + $0x18] sm:$0xff]
  %v467 = vld [vmem:[#allocation2 + $0x20] sm:$0xff]
  %v468 = vld [vmem:[#allocation2 + $0x28] sm:$0xff]
  %v469 = vld [vmem:[#allocation2 + $0x30] sm:$0xff]
  %v470 = vld [vmem:[#allocation2 + $0x38] sm:$0xff]
  %v471 = vpack.c.bf16 %v463, %v463
  %v472 = vpack.c.bf16 %v464, %v464
  %v473 = vpack.c.bf16 %v465, %v465
  %v474 = vpack.c.bf16 %v466, %v466
  %v475 = vpack.c.bf16 %v467, %v467
  %v476 = vpack.c.bf16 %v468, %v468
  %v477 = vpack.c.bf16 %v469, %v469
  %v478 = vpack.c.bf16 %v470, %v470
  %v479 = vld [vmem:[%s2] sm:$0xf]
  %v480 = vld [vmem:[%s2 + $0x4] sm:$0xf]
  %v481 = vld [vmem:[%s2 + $0x8] sm:$0xf]
  %v482 = vld [vmem:[%s2 + $0xc] sm:$0xf]
  %v483 = vld [vmem:[%s2 + $0x10] sm:$0xf]
  %v484 = vld [vmem:[%s2 + $0x14] sm:$0xf]
  %v485 = vld [vmem:[%s2 + $0x18] sm:$0xf]
  %v486 = vld [vmem:[%s2 + $0x1c] sm:$0xf]
  %v487 = vld [vmem:[%s2 + $0x20] sm:$0xf]
  %v488 = vld [vmem:[%s2 + $0x24] sm:$0xf]
  %v489 = vld [vmem:[%s2 + $0x28] sm:$0xf]
  %v490 = vld [vmem:[%s2 + $0x2c] sm:$0xf]
  %v491 = vld [vmem:[%s2 + $0x30] sm:$0xf]
  %v492 = vld [vmem:[%s2 + $0x34] sm:$0xf]
  %v493 = vld [vmem:[%s2 + $0x38] sm:$0xf]
  %v494 = vld [vmem:[%s2 + $0x3c] sm:$0xf]
  %v503 = vunpack.c.l.b16 %v471
  %v504 = vunpack.c.l.b16 %v472
  %v505 = vunpack.c.l.b16 %v473
  %v506 = vunpack.c.l.b16 %v474
  %v507 = vunpack.c.l.b16 %v475
  %v508 = vunpack.c.l.b16 %v476
  %v509 = vunpack.c.l.b16 %v477
  %v510 = vunpack.c.l.b16 %v478
  %v511 = vpack.c.b16 %v504, %v503
  %v512 = vpack.c.b16 %v506, %v505
  %v513 = vpack.c.b16 %v508, %v507
  %v514 = vpack.c.b16 %v510, %v509
  %v535 = vunpack.c.l.b16 %v479
  %v536 = vunpack.c.l.b16 %v480
  %v537 = vunpack.c.l.b16 %v481
  %v538 = vunpack.c.l.b16 %v482
  %v539 = vunpack.c.l.b16 %v483
  %v540 = vunpack.c.l.b16 %v484
  %v541 = vunpack.c.l.b16 %v485
  %v542 = vunpack.c.l.b16 %v486
  %v543 = vunpack.c.l.b16 %v487
  %v544 = vunpack.c.l.b16 %v488
  %v545 = vunpack.c.l.b16 %v489
  %v546 = vunpack.c.l.b16 %v490
  %v547 = vunpack.c.l.b16 %v491
  %v548 = vunpack.c.l.b16 %v492
  %v549 = vunpack.c.l.b16 %v493
  %v550 = vunpack.c.l.b16 %v494
  %v551 = vpack.c.b16 %v536, %v535
  %v552 = vpack.c.b16 %v538, %v537
  %v553 = vpack.c.b16 %v540, %v539
  %v554 = vpack.c.b16 %v542, %v541
  %v555 = vpack.c.b16 %v544, %v543
  %v556 = vpack.c.b16 %v546, %v545
  %v557 = vpack.c.b16 %v548, %v547
  %v558 = vpack.c.b16 %v550, %v549
  %567 = vmatprep.subr.bf16.mxu0 0
  %568 = vmatpush1.bf16.msra.mxu0 %v551
  %569 = vmatprep.subr.bf16.mxu0 0
  %570 = vmatpush1.bf16.msra.mxu0 %v552
  %571 = vmatprep.subr.bf16.mxu0 0
  %572 = vmatpush1.bf16.msra.mxu0 %v553
  %573 = vmatprep.subr.bf16.mxu0 0
  %574 = vmatpush1.bf16.msra.mxu0 %v554
  %575 = vmatprep.subr.bf16.mxu0 0
  %576 = vmatpush1.bf16.msra.mxu0 %v555
  %577 = vmatprep.subr.bf16.mxu0 0
  %578 = vmatpush1.bf16.msra.mxu0 %v556
  %579 = vmatprep.subr.bf16.mxu0 0
  %580 = vmatpush1.bf16.msra.mxu0 %v557
  %581 = vmatprep.subr.bf16.mxu0 0
  %582 = vmatpush1.bf16.msra.mxu0 %v558
  %583 = vmatprep.subr.bf16.mxu0 0
  %584 = vmatpush1.bf16.msra.mxu0 0
  %585 = vmatprep.subr.bf16.mxu0 0
  %586 = vmatpush1.bf16.msra.mxu0 0
  %587 = vmatprep.subr.bf16.mxu0 0
  %588 = vmatpush1.bf16.msra.mxu0 0
  %589 = vmatprep.subr.bf16.mxu0 0
  %590 = vmatpush1.bf16.msra.mxu0 0
  %591 = vmatprep.subr.bf16.mxu0 0
  %592 = vmatpush1.bf16.msra.mxu0 0
  %593 = vmatprep.subr.bf16.mxu0 0
  %594 = vmatpush1.bf16.msra.mxu0 0
  %595 = vmatprep.subr.bf16.mxu0 0
  %596 = vmatpush1.bf16.msra.mxu0 0
  %597 = vmatprep.subr.bf16.mxu0 0
  %598 = vmatpush1.bf16.msra.mxu0 0
  %599 = vmatprep.mubr.bf16.mxu0 0
  %600 = vmatmul.mubr.bf16.gmra.mrb[0].mxu0 %v511
  %v601 = vpop.f32.mrb[0].mxu0
  %v602 = vadd.f32 0.0, %v601
  %v603 = vpop.f32.mrb[0].mxu0
  %v604 = vpop.f32.mrb[0].mxu0
  %v605 = vadd.f32 0.0, %v604
  %v606 = vpop.f32.mrb[0].mxu0
  %607 = vmatprep.mubr.bf16.mxu0 0
  %608 = vmatmul.mubr.bf16.gmra.mrb[0].mxu0 %v512
  %v609 = vpop.f32.mrb[0].mxu0
  %v610 = vadd.f32 0.0, %v609
  %v611 = vpop.f32.mrb[0].mxu0
  %v612 = vpop.f32.mrb[0].mxu0
  %v613 = vadd.f32 0.0, %v612
  %v614 = vpop.f32.mrb[0].mxu0
  %615 = vmatprep.mubr.bf16.mxu0 0
  %616 = vmatmul.mubr.bf16.gmra.mrb[0].mxu0 %v513
  %v617 = vpop.f32.mrb[0].mxu0
  %v618 = vadd.f32 0.0, %v617
  %v619 = vpop.f32.mrb[0].mxu0
  %v620 = vpop.f32.mrb[0].mxu0
  %v621 = vadd.f32 0.0, %v620
  %v622 = vpop.f32.mrb[0].mxu0
  %623 = vmatprep.mubr.bf16.mxu0 0
  %624 = vmatmul.mubr.bf16.gmra.mrb[0].mxu0 %v514
  %v625 = vpop.f32.mrb[0].mxu0
  %v626 = vadd.f32 0.0, %v625
  %v627 = vpop.f32.mrb[0].mxu0
  %v628 = vpop.f32.mrb[0].mxu0
  %v629 = vadd.f32 0.0, %v628
  %v630 = vpop.f32.mrb[0].mxu0
  %631 = vdwg.mxu0
  %s632 = scalar_lea.vmem %s4, 1
  %v633 = vld [vmem:[%s632] sm:$0x1]
  %v635 = vlaneseq
  %v636 = vshrl.u32 %v635, 7
  %v637 = vsub.s32 0, %v636
  %v638 = vrot.slane %v633, %v637
  %v640 = vadd.f32 %v602, %v638
  %v641 = vadd.f32 %v605, %v638
  %v642 = vadd.f32 %v610, %v638
  %v643 = vadd.f32 %v613, %v638
  %v644 = vadd.f32 %v618, %v638
  %v645 = vadd.f32 %v621, %v638
  %v646 = vadd.f32 %v626, %v638
  %v647 = vadd.f32 %v629, %v638
  %648 = vst [vmem:[#allocation3] sm:$0xff] %v640
  %649 = vst [vmem:[#allocation3 + $0x8] sm:$0xff] %v641
  %650 = vst [vmem:[#allocation3 + $0x10] sm:$0xff] %v642
  %651 = vst [vmem:[#allocation3 + $0x18] sm:$0xff] %v643
  %652 = vst [vmem:[#allocation3 + $0x20] sm:$0xff] %v644
  %653 = vst [vmem:[#allocation3 + $0x28] sm:$0xff] %v645
  %654 = vst [vmem:[#allocation3 + $0x30] sm:$0xff] %v646
  %655 = vst [vmem:[#allocation3 + $0x38] sm:$0xff] %v647
  %s656 = scalar_lea.vmem %s3, 64
  %v657 = vld [vmem:[%s656] sm:$0xf]
  %v658 = vld [vmem:[%s656 + $0x4] sm:$0xf]
  %v659 = vld [vmem:[%s656 + $0x8] sm:$0xf]
  %v660 = vld [vmem:[%s656 + $0xc] sm:$0xf]
  %v661 = vld [vmem:[%s656 + $0x10] sm:$0xf]
  %v662 = vld [vmem:[%s656 + $0x14] sm:$0xf]
  %v663 = vld [vmem:[%s656 + $0x18] sm:$0xf]
  %v664 = vld [vmem:[%s656 + $0x1c] sm:$0xf]
  %v665 = vld [vmem:[%s656 + $0x20] sm:$0xf]
  %v666 = vld [vmem:[%s656 + $0x24] sm:$0xf]
  %v667 = vld [vmem:[%s656 + $0x28] sm:$0xf]
  %v668 = vld [vmem:[%s656 + $0x2c] sm:$0xf]
  %v669 = vld [vmem:[%s656 + $0x30] sm:$0xf]
  %v670 = vld [vmem:[%s656 + $0x34] sm:$0xf]
  %v671 = vld [vmem:[%s656 + $0x38] sm:$0xf]
  %v672 = vld [vmem:[%s656 + $0x3c] sm:$0xf]
  %s673 = scalar_lea.vmem %s1, 8
  %v674 = vld [vmem:[%s673] sm:$0xff]
  %v675 = vld [vmem:[#allocation3] sm:$0xff]
  %v676 = vpack.c.bf16 %v674, %v674
  %v693 = vunpack.c.l.b16 %v657
  %v694 = vunpack.c.l.b16 %v658
  %v695 = vunpack.c.l.b16 %v659
  %v696 = vunpack.c.l.b16 %v660
  %v697 = vunpack.c.l.b16 %v661
  %v698 = vunpack.c.l.b16 %v662
  %v699 = vunpack.c.l.b16 %v663
  %v700 = vunpack.c.l.b16 %v664
  %v701 = vunpack.c.l.b16 %v665
  %v702 = vunpack.c.l.b16 %v666
  %v703 = vunpack.c.l.b16 %v667
  %v704 = vunpack.c.l.b16 %v668
  %v705 = vunpack.c.l.b16 %v669
  %v706 = vunpack.c.l.b16 %v670
  %v707 = vunpack.c.l.b16 %v671
  %v708 = vunpack.c.l.b16 %v672
  %v709 = vpack.c.b16 %v694, %v693
  %v710 = vpack.c.b16 %v696, %v695
  %v711 = vpack.c.b16 %v698, %v697
  %v712 = vpack.c.b16 %v700, %v699
  %v713 = vpack.c.b16 %v702, %v701
  %v714 = vpack.c.b16 %v704, %v703
  %v715 = vpack.c.b16 %v706, %v705
  %v716 = vpack.c.b16 %v708, %v707
  %725 = vmatprep.subr.bf16.mxu0 0
  %726 = vmatpush1.bf16.msra.mxu0 %v709
  %727 = vmatprep.subr.bf16.mxu0 0
  %728 = vmatpush1.bf16.msra.mxu0 %v710
  %729 = vmatprep.subr.bf16.mxu0 0
  %730 = vmatpush1.bf16.msra.mxu0 %v711
  %731 = vmatprep.subr.bf16.mxu0 0
  %732 = vmatpush1.bf16.msra.mxu0 %v712
  %733 = vmatprep.subr.bf16.mxu0 0
  %734 = vmatpush1.bf16.msra.mxu0 %v713
  %735 = vmatprep.subr.bf16.mxu0 0
  %736 = vmatpush1.bf16.msra.mxu0 %v714
  %737 = vmatprep.subr.bf16.mxu0 0
  %738 = vmatpush1.bf16.msra.mxu0 %v715
  %739 = vmatprep.subr.bf16.mxu0 0
  %740 = vmatpush1.bf16.msra.mxu0 %v716
  %741 = vmatprep.subr.bf16.mxu0 0
  %742 = vmatpush1.bf16.msra.mxu0 0
  %743 = vmatprep.subr.bf16.mxu0 0
  %744 = vmatpush1.bf16.msra.mxu0 0
  %745 = vmatprep.subr.bf16.mxu0 0
  %746 = vmatpush1.bf16.msra.mxu0 0
  %747 = vmatprep.subr.bf16.mxu0 0
  %748 = vmatpush1.bf16.msra.mxu0 0
  %749 = vmatprep.subr.bf16.mxu0 0
  %750 = vmatpush1.bf16.msra.mxu0 0
  %751 = vmatprep.subr.bf16.mxu0 0
  %752 = vmatpush1.bf16.msra.mxu0 0
  %753 = vmatprep.subr.bf16.mxu0 0
  %754 = vmatpush1.bf16.msra.mxu0 0
  %755 = vmatprep.subr.bf16.mxu0 0
  %756 = vmatpush1.bf16.msra.mxu0 0
  %757 = vmatprep.mubr.bf16.mxu0 0
  %758 = vmatmul.mubr.bf16.gmra.mrb[0].mxu0 %v676
  %v759 = vpop.f32.mrb[0].mxu0
  %v760 = vadd.f32 0.0, %v759
  %v761 = vpop.f32.mrb[0].mxu0
  %v762 = vpop.f32.mrb[0].mxu0
  %v763 = vpop.f32.mrb[0].mxu0
  %764 = vdwg.mxu0
  %v765 = vadd.f32 %v675, %v760
  %v766 = vtanh.pop %v765
  %767 = vst [vmem:[%s5] sm:$0xff] %v766
  %s768 = scalar_lea.vmem [#allocation3], 8
  %v769 = vld [vmem:[%s768] sm:$0xff]
  %v770 = vpack.c.bf16 %v766, %v766
  %771 = vmatprep.subr.bf16.mxu0 0
  %772 = vmatpush1.bf16.msra.mxu0 %v709
  %773 = vmatprep.subr.bf16.mxu0 0
  %774 = vmatpush1.bf16.msra.mxu0 %v710
  %775 = vmatprep.subr.bf16.mxu0 0
  %776 = vmatpush1.bf16.msra.mxu0 %v711
  %777 = vmatprep.subr.bf16.mxu0 0
  %778 = vmatpush1.bf16.msra.mxu0 %v712
  %779 = vmatprep.subr.bf16.mxu0 0
  %780 = vmatpush1.bf16.msra.mxu0 %v713
  %781 = vmatprep.subr.bf16.mxu0 0
  %782 = vmatpush1.bf16.msra.mxu0 %v714
  %783 = vmatprep.subr.bf16.mxu0 0
  %784 = vmatpush1.bf16.msra.mxu0 %v715
  %785 = vmatprep.subr.bf16.mxu0 0
  %786 = vmatpush1.bf16.msra.mxu0 %v716
  %787 = vmatprep.subr.bf16.mxu0 0
  %788 = vmatpush1.bf16.msra.mxu0 0
  %789 = vmatprep.subr.bf16.mxu0 0
  %790 = vmatpush1.bf16.msra.mxu0 0
  %791 = vmatprep.subr.bf16.mxu0 0
  %792 = vmatpush1.bf16.msra.mxu0 0
  %793 = vmatprep.subr.bf16.mxu0 0
  %794 = vmatpush1.bf16.msra.mxu0 0
  %795 = vmatprep.subr.bf16.mxu0 0
  %796 = vmatpush1.bf16.msra.mxu0 0
  %797 = vmatprep.subr.bf16.mxu0 0
  %798 = vmatpush1.bf16.msra.mxu0 0
  %799 = vmatprep.subr.bf16.mxu0 0
  %800 = vmatpush1.bf16.msra.mxu0 0
  %801 = vmatprep.subr.bf16.mxu0 0
  %802 = vmatpush1.bf16.msra.mxu0 0
  %803 = vmatprep.mubr.bf16.mxu0 0
  %804 = vmatmul.mubr.bf16.gmra.mrb[0].mxu0 %v770
  %v805 = vpop.f32.mrb[0].mxu0
  %v806 = vadd.f32 0.0, %v805
  %v807 = vpop.f32.mrb[0].mxu0
  %v808 = vpop.f32.mrb[0].mxu0
  %v809 = vpop.f32.mrb[0].mxu0
  %810 = vdwg.mxu0
  %v811 = vadd.f32 %v769, %v806
  %v812 = vtanh.pop %v811
  %s813 = scalar_lea.vmem %s5, 8
  %814 = vst [vmem:[%s813] sm:$0xff] %v812
  %s815 = scalar_lea.vmem [#allocation3], 16
  %v816 = vld [vmem:[%s815] sm:$0xff]
  %v817 = vpack.c.bf16 %v812, %v812
  %818 = vmatprep.subr.bf16.mxu0 0
  %819 = vmatpush1.bf16.msra.mxu0 %v709
  %820 = vmatprep.subr.bf16.mxu0 0
  %821 = vmatpush1.bf16.msra.mxu0 %v710
  %822 = vmatprep.subr.bf16.mxu0 0
  %823 = vmatpush1.bf16.msra.mxu0 %v711
  %824 = vmatprep.subr.bf16.mxu0 0
  %825 = vmatpush1.bf16.msra.mxu0 %v712
  %826 = vmatprep.subr.bf16.mxu0 0
  %827 = vmatpush1.bf16.msra.mxu0 %v713
  %828 = vmatprep.subr.bf16.mxu0 0
  %829 = vmatpush1.bf16.msra.mxu0 %v714
  %830 = vmatprep.subr.bf16.mxu0 0
  %831 = vmatpush1.bf16.msra.mxu0 %v715
  %832 = vmatprep.subr.bf16.mxu0 0
  %833 = vmatpush1.bf16.msra.mxu0 %v716
  %834 = vmatprep.subr.bf16.mxu0 0
  %835 = vmatpush1.bf16.msra.mxu0 0
  %836 = vmatprep.subr.bf16.mxu0 0
  %837 = vmatpush1.bf16.msra.mxu0 0
  %838 = vmatprep.subr.bf16.mxu0 0
  %839 = vmatpush1.bf16.msra.mxu0 0
  %840 = vmatprep.subr.bf16.mxu0 0
  %841 = vmatpush1.bf16.msra.mxu0 0
  %842 = vmatprep.subr.bf16.mxu0 0
  %843 = vmatpush1.bf16.msra.mxu0 0
  %844 = vmatprep.subr.bf16.mxu0 0
  %845 = vmatpush1.bf16.msra.mxu0 0
  %846 = vmatprep.subr.bf16.mxu0 0
  %847 = vmatpush1.bf16.msra.mxu0 0
  %848 = vmatprep.subr.bf16.mxu0 0
  %849 = vmatpush1.bf16.msra.mxu0 0
  %850 = vmatprep.mubr.bf16.mxu0 0
  %851 = vmatmul.mubr.bf16.gmra.mrb[0].mxu0 %v817
  %v852 = vpop.f32.mrb[0].mxu0
  %v853 = vadd.f32 0.0, %v852
  %v854 = vpop.f32.mrb[0].mxu0
  %v855 = vpop.f32.mrb[0].mxu0
  %v856 = vpop.f32.mrb[0].mxu0
  %857 = vdwg.mxu0
  %v858 = vadd.f32 %v816, %v853
  %v859 = vtanh.pop %v858
  %s860 = scalar_lea.vmem %s5, 16
  %861 = vst [vmem:[%s860] sm:$0xff] %v859
  %s862 = scalar_lea.vmem [#allocation3], 24
  %v863 = vld [vmem:[%s862] sm:$0xff]
  %v864 = vpack.c.bf16 %v859, %v859
  %865 = vmatprep.subr.bf16.mxu0 0
  %866 = vmatpush1.bf16.msra.mxu0 %v709
  %867 = vmatprep.subr.bf16.mxu0 0
  %868 = vmatpush1.bf16.msra.mxu0 %v710
  %869 = vmatprep.subr.bf16.mxu0 0
  %870 = vmatpush1.bf16.msra.mxu0 %v711
  %871 = vmatprep.subr.bf16.mxu0 0
  %872 = vmatpush1.bf16.msra.mxu0 %v712
  %873 = vmatprep.subr.bf16.mxu0 0
  %874 = vmatpush1.bf16.msra.mxu0 %v713
  %875 = vmatprep.subr.bf16.mxu0 0
  %876 = vmatpush1.bf16.msra.mxu0 %v714
  %877 = vmatprep.subr.bf16.mxu0 0
  %878 = vmatpush1.bf16.msra.mxu0 %v715
  %879 = vmatprep.subr.bf16.mxu0 0
  %880 = vmatpush1.bf16.msra.mxu0 %v716
  %881 = vmatprep.subr.bf16.mxu0 0
  %882 = vmatpush1.bf16.msra.mxu0 0
  %883 = vmatprep.subr.bf16.mxu0 0
  %884 = vmatpush1.bf16.msra.mxu0 0
  %885 = vmatprep.subr.bf16.mxu0 0
  %886 = vmatpush1.bf16.msra.mxu0 0
  %887 = vmatprep.subr.bf16.mxu0 0
  %888 = vmatpush1.bf16.msra.mxu0 0
  %889 = vmatprep.subr.bf16.mxu0 0
  %890 = vmatpush1.bf16.msra.mxu0 0
  %891 = vmatprep.subr.bf16.mxu0 0
  %892 = vmatpush1.bf16.msra.mxu0 0
  %893 = vmatprep.subr.bf16.mxu0 0
  %894 = vmatpush1.bf16.msra.mxu0 0
  %895 = vmatprep.subr.bf16.mxu0 0
  %896 = vmatpush1.bf16.msra.mxu0 0
  %897 = vmatprep.mubr.bf16.mxu0 0
  %898 = vmatmul.mubr.bf16.gmra.mrb[0].mxu0 %v864
  %v899 = vpop.f32.mrb[0].mxu0
  %v900 = vadd.f32 0.0, %v899
  %v901 = vpop.f32.mrb[0].mxu0
  %v902 = vpop.f32.mrb[0].mxu0
  %v903 = vpop.f32.mrb[0].mxu0
  %904 = vdwg.mxu0
  %v905 = vadd.f32 %v863, %v900
  %v906 = vtanh.pop %v905
  %s907 = scalar_lea.vmem %s5, 24
  %908 = vst [vmem:[%s907] sm:$0xff] %v906
  %s909 = scalar_lea.vmem [#allocation3], 32
  %v910 = vld [vmem:[%s909] sm:$0xff]
  %v911 = vpack.c.bf16 %v906, %v906
  %912 = vmatprep.subr.bf16.mxu0 0
  %913 = vmatpush1.bf16.msra.mxu0 %v709
  %914 = vmatprep.subr.bf16.mxu0 0
  %915 = vmatpush1.bf16.msra.mxu0 %v710
  %916 = vmatprep.subr.bf16.mxu0 0
  %917 = vmatpush1.bf16.msra.mxu0 %v711
  %918 = vmatprep.subr.bf16.mxu0 0
  %919 = vmatpush1.bf16.msra.mxu0 %v712
  %920 = vmatprep.subr.bf16.mxu0 0
  %921 = vmatpush1.bf16.msra.mxu0 %v713
  %922 = vmatprep.subr.bf16.mxu0 0
  %923 = vmatpush1.bf16.msra.mxu0 %v714
  %924 = vmatprep.subr.bf16.mxu0 0
  %925 = vmatpush1.bf16.msra.mxu0 %v715
  %926 = vmatprep.subr.bf16.mxu0 0
  %927 = vmatpush1.bf16.msra.mxu0 %v716
  %928 = vmatprep.subr.bf16.mxu0 0
  %929 = vmatpush1.bf16.msra.mxu0 0
  %930 = vmatprep.subr.bf16.mxu0 0
  %931 = vmatpush1.bf16.msra.mxu0 0
  %932 = vmatprep.subr.bf16.mxu0 0
  %933 = vmatpush1.bf16.msra.mxu0 0
  %934 = vmatprep.subr.bf16.mxu0 0
  %935 = vmatpush1.bf16.msra.mxu0 0
  %936 = vmatprep.subr.bf16.mxu0 0
  %937 = vmatpush1.bf16.msra.mxu0 0
  %938 = vmatprep.subr.bf16.mxu0 0
  %939 = vmatpush1.bf16.msra.mxu0 0
  %940 = vmatprep.subr.bf16.mxu0 0
  %941 = vmatpush1.bf16.msra.mxu0 0
  %942 = vmatprep.subr.bf16.mxu0 0
  %943 = vmatpush1.bf16.msra.mxu0 0
  %944 = vmatprep.mubr.bf16.mxu0 0
  %945 = vmatmul.mubr.bf16.gmra.mrb[0].mxu0 %v911
  %v946 = vpop.f32.mrb[0].mxu0
  %v947 = vadd.f32 0.0, %v946
  %v948 = vpop.f32.mrb[0].mxu0
  %v949 = vpop.f32.mrb[0].mxu0
  %v950 = vpop.f32.mrb[0].mxu0
  %951 = vdwg.mxu0
  %v952 = vadd.f32 %v910, %v947
  %v953 = vtanh.pop %v952
  %s954 = scalar_lea.vmem %s5, 32
  %955 = vst [vmem:[%s954] sm:$0xff] %v953
  %s956 = scalar_lea.vmem [#allocation3], 40
  %v957 = vld [vmem:[%s956] sm:$0xff]
  %v958 = vpack.c.bf16 %v953, %v953
  %959 = vmatprep.subr.bf16.mxu0 0
  %960 = vmatpush1.bf16.msra.mxu0 %v709
  %961 = vmatprep.subr.bf16.mxu0 0
  %962 = vmatpush1.bf16.msra.mxu0 %v710
  %963 = vmatprep.subr.bf16.mxu0 0
  %964 = vmatpush1.bf16.msra.mxu0 %v711
  %965 = vmatprep.subr.bf16.mxu0 0
  %966 = vmatpush1.bf16.msra.mxu0 %v712
  %967 = vmatprep.subr.bf16.mxu0 0
  %968 = vmatpush1.bf16.msra.mxu0 %v713
  %969 = vmatprep.subr.bf16.mxu0 0
  %970 = vmatpush1.bf16.msra.mxu0 %v714
  %971 = vmatprep.subr.bf16.mxu0 0
  %972 = vmatpush1.bf16.msra.mxu0 %v715
  %973 = vmatprep.subr.bf16.mxu0 0
  %974 = vmatpush1.bf16.msra.mxu0 %v716
  %975 = vmatprep.subr.bf16.mxu0 0
  %976 = vmatpush1.bf16.msra.mxu0 0
  %977 = vmatprep.subr.bf16.mxu0 0
  %978 = vmatpush1.bf16.msra.mxu0 0
  %979 = vmatprep.subr.bf16.mxu0 0
  %980 = vmatpush1.bf16.msra.mxu0 0
  %981 = vmatprep.subr.bf16.mxu0 0
  %982 = vmatpush1.bf16.msra.mxu0 0
  %983 = vmatprep.subr.bf16.mxu0 0
  %984 = vmatpush1.bf16.msra.mxu0 0
  %985 = vmatprep.subr.bf16.mxu0 0
  %986 = vmatpush1.bf16.msra.mxu0 0
  %987 = vmatprep.subr.bf16.mxu0 0
  %988 = vmatpush1.bf16.msra.mxu0 0
  %989 = vmatprep.subr.bf16.mxu0 0
  %990 = vmatpush1.bf16.msra.mxu0 0
  %991 = vmatprep.mubr.bf16.mxu0 0
  %992 = vmatmul.mubr.bf16.gmra.mrb[0].mxu0 %v958
  %v993 = vpop.f32.mrb[0].mxu0
  %v994 = vadd.f32 0.0, %v993
  %v995 = vpop.f32.mrb[0].mxu0
  %v996 = vpop.f32.mrb[0].mxu0
  %v997 = vpop.f32.mrb[0].mxu0
  %998 = vdwg.mxu0
  %v999 = vadd.f32 %v957, %v994
  %v1000 = vtanh.pop %v999
  %s1001 = scalar_lea.vmem %s5, 40
  %1002 = vst [vmem:[%s1001] sm:$0xff] %v1000
  %s1003 = scalar_lea.vmem [#allocation3], 48
  %v1004 = vld [vmem:[%s1003] sm:$0xff]
  %v1005 = vpack.c.bf16 %v1000, %v1000
  %1006 = vmatprep.subr.bf16.mxu0 0
  %1007 = vmatpush1.bf16.msra.mxu0 %v709
  %1008 = vmatprep.subr.bf16.mxu0 0
  %1009 = vmatpush1.bf16.msra.mxu0 %v710
  %1010 = vmatprep.subr.bf16.mxu0 0
  %1011 = vmatpush1.bf16.msra.mxu0 %v711
  %1012 = vmatprep.subr.bf16.mxu0 0
  %1013 = vmatpush1.bf16.msra.mxu0 %v712
  %1014 = vmatprep.subr.bf16.mxu0 0
  %1015 = vmatpush1.bf16.msra.mxu0 %v713
  %1016 = vmatprep.subr.bf16.mxu0 0
  %1017 = vmatpush1.bf16.msra.mxu0 %v714
  %1018 = vmatprep.subr.bf16.mxu0 0
  %1019 = vmatpush1.bf16.msra.mxu0 %v715
  %1020 = vmatprep.subr.bf16.mxu0 0
  %1021 = vmatpush1.bf16.msra.mxu0 %v716
  %1022 = vmatprep.subr.bf16.mxu0 0
  %1023 = vmatpush1.bf16.msra.mxu0 0
  %1024 = vmatprep.subr.bf16.mxu0 0
  %1025 = vmatpush1.bf16.msra.mxu0 0
  %1026 = vmatprep.subr.bf16.mxu0 0
  %1027 = vmatpush1.bf16.msra.mxu0 0
  %1028 = vmatprep.subr.bf16.mxu0 0
  %1029 = vmatpush1.bf16.msra.mxu0 0
  %1030 = vmatprep.subr.bf16.mxu0 0
  %1031 = vmatpush1.bf16.msra.mxu0 0
  %1032 = vmatprep.subr.bf16.mxu0 0
  %1033 = vmatpush1.bf16.msra.mxu0 0
  %1034 = vmatprep.subr.bf16.mxu0 0
  %1035 = vmatpush1.bf16.msra.mxu0 0
  %1036 = vmatprep.subr.bf16.mxu0 0
  %1037 = vmatpush1.bf16.msra.mxu0 0
  %1038 = vmatprep.mubr.bf16.mxu0 0
  %1039 = vmatmul.mubr.bf16.gmra.mrb[0].mxu0 %v1005
  %v1040 = vpop.f32.mrb[0].mxu0
  %v1041 = vadd.f32 0.0, %v1040
  %v1042 = vpop.f32.mrb[0].mxu0
  %v1043 = vpop.f32.mrb[0].mxu0
  %v1044 = vpop.f32.mrb[0].mxu0
  %1045 = vdwg.mxu0
  %v1046 = vadd.f32 %v1004, %v1041
  %v1047 = vtanh.pop %v1046
  %s1048 = scalar_lea.vmem %s5, 48
  %1049 = vst [vmem:[%s1048] sm:$0xff] %v1047
  %s1050 = scalar_lea.vmem [#allocation3], 56
  %v1051 = vld [vmem:[%s1050] sm:$0xff]
  %v1052 = vpack.c.bf16 %v1047, %v1047
  %1053 = vmatprep.subr.bf16.mxu0 0
  %1054 = vmatpush1.bf16.msra.mxu0 %v709
  %1055 = vmatprep.subr.bf16.mxu0 0
  %1056 = vmatpush1.bf16.msra.mxu0 %v710
  %1057 = vmatprep.subr.bf16.mxu0 0
  %1058 = vmatpush1.bf16.msra.mxu0 %v711
  %1059 = vmatprep.subr.bf16.mxu0 0
  %1060 = vmatpush1.bf16.msra.mxu0 %v712
  %1061 = vmatprep.subr.bf16.mxu0 0
  %1062 = vmatpush1.bf16.msra.mxu0 %v713
  %1063 = vmatprep.subr.bf16.mxu0 0
  %1064 = vmatpush1.bf16.msra.mxu0 %v714
  %1065 = vmatprep.subr.bf16.mxu0 0
  %1066 = vmatpush1.bf16.msra.mxu0 %v715
  %1067 = vmatprep.subr.bf16.mxu0 0
  %1068 = vmatpush1.bf16.msra.mxu0 %v716
  %1069 = vmatprep.subr.bf16.mxu0 0
  %1070 = vmatpush1.bf16.msra.mxu0 0
  %1071 = vmatprep.subr.bf16.mxu0 0
  %1072 = vmatpush1.bf16.msra.mxu0 0
  %1073 = vmatprep.subr.bf16.mxu0 0
  %1074 = vmatpush1.bf16.msra.mxu0 0
  %1075 = vmatprep.subr.bf16.mxu0 0
  %1076 = vmatpush1.bf16.msra.mxu0 0
  %1077 = vmatprep.subr.bf16.mxu0 0
  %1078 = vmatpush1.bf16.msra.mxu0 0
  %1079 = vmatprep.subr.bf16.mxu0 0
  %1080 = vmatpush1.bf16.msra.mxu0 0
  %1081 = vmatprep.subr.bf16.mxu0 0
  %1082 = vmatpush1.bf16.msra.mxu0 0
  %1083 = vmatprep.subr.bf16.mxu0 0
  %1084 = vmatpush1.bf16.msra.mxu0 0
  %1085 = vmatprep.mubr.bf16.mxu0 0
  %1086 = vmatmul.mubr.bf16.gmra.mrb[0].mxu0 %v1052
  %v1087 = vpop.f32.mrb[0].mxu0
  %v1088 = vadd.f32 0.0, %v1087
  %v1089 = vpop.f32.mrb[0].mxu0
  %v1090 = vpop.f32.mrb[0].mxu0
  %v1091 = vpop.f32.mrb[0].mxu0
  %1092 = vdwg.mxu0
  %v1093 = vadd.f32 %v1051, %v1088
  %v1094 = vtanh.pop %v1093
  %s1095 = scalar_lea.vmem %s5, 56
  %1096 = vst [vmem:[%s1095] sm:$0xff] %v1094
  %s1097 = scalar_lea.vmem %s6, 8
  %1098 = vst [vmem:[%s1097] sm:$0xff] %v1094
  // Predicated region
  $region22: #{vanilla_rnn_forward.1} parent=0 // pred_check
    _
  $region23: #{vanilla_rnn_forward.1} parent=0 // pred_check_branch
    %1100 = sbr.rel (0) target = $region25
  $region24: #{vanilla_rnn_forward.1} parent=0 // pred_region
    _
  $region25: #{vanilla_rnn_forward.1} parent=0 // pred_fallthru
    _
  // Predicated region
  $region26: #{vanilla_rnn_forward.1} parent=0 // pred_check
    _
  $region27: #{vanilla_rnn_forward.1} parent=0 // pred_check_branch
    %1102 = sbr.rel (0) target = $region29
  $region28: #{vanilla_rnn_forward.1} parent=0 // pred_region
    _
  $region29: #{vanilla_rnn_forward.1} parent=0 // pred_fallthru
    _
  // Predicated region
  $region30: #{vanilla_rnn_forward.1} parent=0 // pred_check
    _
  $region31: #{vanilla_rnn_forward.1} parent=0 // pred_check_branch
    %1104 = sbr.rel (0) target = $region33
  $region32: #{vanilla_rnn_forward.1} parent=0 // pred_region
    _
  $region33: #{vanilla_rnn_forward.1} parent=0 // pred_fallthru
    _
  // Predicated region
  $region34: #{vanilla_rnn_forward.1} parent=0 // pred_check
    _
  $region35: #{vanilla_rnn_forward.1} parent=0 // pred_check_branch
    %1106 = sbr.rel (0) target = $region37
  $region36: #{vanilla_rnn_forward.1} parent=0 // pred_region
    _
  $region37: #{vanilla_rnn_forward.1} parent=0 // pred_fallthru
    _

</llo_original>
